<compile_context>
chip_gen: v5e
topology: v5e:2x2
jax: 0.10.0
libtpu: 0.0.40
codegen_flags: <defaults>
</compile_context>

<pallas_src>
import functools

import jax
import jax.numpy as jnp
from jax import lax
from jax.experimental import pallas as pl
from jax.experimental.pallas import tpu as pltpu


# ----------------------------- kernel ---------------------------------------

def _decoder_kernel(p_ref, ppt_ref, fea_ref,
                    wp_ref, bp_ref,
                    wc_ref, bc_ref,
                    w0_ref, b0_ref,
                    w1_ref, b1_ref,
                    wout_ref, bout_ref,
                    out_ref,
                    *, n_blocks, inv_var, dim, c_dim, n_chunks, chunk):
    f32 = jnp.float32
    bf16 = jnp.bfloat16

    q = p_ref[0]                               # (TT, D)  f32 query-point tile
    tt = q.shape[0]

    # ---- sample_point_feature (gaussian mode), N-chunked ---------------------
    # Unnormalized feature sum and the weight row-sum are accumulated together:
    # fea_ref carries an extra ones-row, so the MXU computes sum(w) for free.
    # Padded context columns are all-zero and therefore contribute nothing.
    c_acc = jnp.zeros((tt, c_dim + 1), f32)
    for nc in range(n_chunks):
        lo = nc * chunk
        pts = ppt_ref[0, :, lo:lo + chunk]     # (D, NC)    f32 positions^T
        feaT = fea_ref[0, :, lo:lo + chunk]    # (C+1, NC)  bf16 features^T (+1s)
        # ||q - p||^2 on the VPU (broadcast-subtract-square over D ~ 3).
        d0 = q[:, 0:1] - pts[0:1, :]           # (TT, NC)
        sq = d0 * d0
        for d in range(1, dim):
            dd = q[:, d:d + 1] - pts[d:d + 1, :]
            sq = sq + dd * dd
        # Module: exp(-((||d||+1e-5)^2)/var). The (1e-5)^2 term cancels under
        # normalization; the 2e-5*||d|| cross term is <~1e-3 in the exponent,
        # so we drop the sqrt + epsilon re-square entirely.
        w = jnp.exp(sq * (-inv_var))           # (TT, NC)   f32, EUP exp
        c_acc = c_acc + lax.dot_general(
            w.astype(bf16), feaT,
            dimension_numbers=(((1,), (1,)), ((), ())),
            preferred_element_type=f32)        # (TT, C+1)

    denom = jnp.maximum(c_acc[:, c_dim:c_dim + 1], 1e-30)
    c = c_acc[:, :c_dim] * pl.reciprocal(denom, approx=True)   # (TT, C)

    # ---- fc_p ------------------------------------------------------------------
    net = jnp.dot(q.astype(bf16), wp_ref[...],
                  preferred_element_type=f32) + bp_ref[...]     # (TT, H)
    hid = net.shape[-1]

    # ---- fused fc_c: single (TT, C) x (C, n_blocks*H) matmul -------------------
    cc = jnp.dot(c.astype(bf16), wc_ref[...],
                 preferred_element_type=f32)                    # (TT, nb*H)

    # ---- n_blocks x (add fc_c slice -> ResnetBlockFC) --------------------------
    for i in range(n_blocks):
        net = net + cc[:, i * hid:(i + 1) * hid] + bc_ref[i]
        h = jnp.dot(jnp.maximum(net, 0.0).astype(bf16), w0_ref[i],
                    preferred_element_type=f32) + b0_ref[i]
        dx = jnp.dot(jnp.maximum(h, 0.0).astype(bf16), w1_ref[i],
                     preferred_element_type=f32) + b1_ref[i]
        net = net + dx

    # ---- fc_out, produced directly as a lane-dense (1, TT) row -----------------
    out_row = lax.dot_general(
        wout_ref[...], jnp.maximum(net, 0.0).astype(bf16),
        dimension_numbers=(((1,), (1,)), ((), ())),
        preferred_element_type=f32)                             # (1, TT)
    out_ref[0] = out_row + bout_ref[...]


# ----------------------------- wrapper ---------------------------------------

def _round_up(x, m):
    return -(-x // m) * m


def _pick_t_tile(T):
    # One tile if T is small; otherwise 512 (multiple of 128 -> lane-dense
    # stores; the (TT, N-chunk) working set stays at a few MiB).
    if T <= 512:
        return max(8, _round_up(T, 8))
    return 512


def _pick_n_chunk(N):
    # N processed in lane-dense chunks of <= 1024 inside the kernel so the
    # (TT, NC) f32 intermediates stay well under v7x's 64 MiB VMEM.
    return min(1024, _round_up(N, 128))


def _prepare_params(params, n_blocks):
    """Host-side: transpose / stack / cast weights into kernel-friendly layouts."""
    f32, bf16 = jnp.float32, jnp.bfloat16
    H, _ = params["wp"].shape
    C = params["wc"].shape[-1]
    wp_t = jnp.asarray(params["wp"], f32).T.astype(bf16)                 # (D, H)
    bp = jnp.asarray(params["bp"], f32).reshape(1, H)
    # fuse the n_blocks fc_c projections into one (C, n_blocks*H) matrix
    wc_all = jnp.transpose(jnp.asarray(params["wc"], f32),
                           (2, 0, 1)).reshape(C, n_blocks * H).astype(bf16)
    bc = jnp.asarray(params["bc"], f32).reshape(n_blocks, 1, H)
    w0_t = jnp.transpose(jnp.asarray(params["w0"], f32), (0, 2, 1)).astype(bf16)
    b0 = jnp.asarray(params["b0"], f32).reshape(n_blocks, 1, H)
    w1_t = jnp.transpose(jnp.asarray(params["w1"], f32), (0, 2, 1)).astype(bf16)
    b1 = jnp.asarray(params["b1"], f32).reshape(n_blocks, 1, H)
    wout = jnp.asarray(params["wout"], f32).reshape(1, H).astype(bf16)   # (1, H)
    bout = jnp.asarray(params["bout"], f32).reshape(1, 1)
    return (wp_t, bp, wc_all, bc, w0_t, b0, w1_t, b1, wout, bout)


def local_point_decoder(p, pp, fea, params, *, n_blocks, var):
    """Pallas forward of LocalPointDecoder (gaussian sample_mode, relu actvn)."""
    f32, bf16 = jnp.float32, jnp.bfloat16
    B, T, D = p.shape
    _, N, C = fea.shape
    H = params["wp"].shape[0]

    weights = _prepare_params(params, n_blocks)

    # Context arrays, lane-dense: positions^T (B, D, N_pad) f32 and
    # features^T + ones-row (B, C+1, N_pad) bf16.  Padded columns are all-zero,
    # so they contribute nothing to either the feature sum or the weight sum.
    NC = _pick_n_chunk(N)
    N_pad = _round_up(N, NC)
    pp_t = jnp.transpose(jnp.asarray(pp, f32), (0, 2, 1))                 # (B, D, N)
    fea_t = jnp.transpose(jnp.asarray(fea, f32), (0, 2, 1))               # (B, C, N)
    fea_aug = jnp.concatenate([fea_t, jnp.ones((B, 1, N), f32)], axis=1)  # (B, C+1, N)
    if N_pad != N:
        pp_t = jnp.pad(pp_t, ((0, 0), (0, 0), (0, N_pad - N)))
        fea_aug = jnp.pad(fea_aug, ((0, 0), (0, 0), (0, N_pad - N)))
    fea_aug = fea_aug.astype(bf16)

    p = jnp.asarray(p, f32)
    TT = _pick_t_tile(T)
    nT = -(-T // TT)
    T_pad = nT * TT
    if T_pad != T:
        p = jnp.pad(p, ((0, 0), (0, T_pad - T), (0, 0)))

    kernel = functools.partial(
        _decoder_kernel, n_blocks=n_blocks, inv_var=float(1.0 / var),
        dim=D, c_dim=C, n_chunks=N_pad // NC, chunk=NC)

    def _resident(arr):
        nd = arr.ndim
        return pl.BlockSpec(arr.shape, lambda b, t, _nd=nd: (0,) * _nd)

    # VMEM budget: actual demand (weights + context + tiles double-buffered,
    # plus the chunked elementwise working set), capped by the device's real
    # VMEM capacity with headroom (v5e/v6e: ~128 MiB, v7x: 64 MiB fallback).
    weight_bytes = sum(int(w.size) * w.dtype.itemsize for w in weights)
    ctx_bytes = D * N_pad * 4 + (C + 1) * N_pad * 2
    tile_bytes = TT * D * 4 + TT * 4
    work_bytes = 4 * TT * NC * 4 + TT * (C + 1) * 4 + TT * (n_blocks * H + 4 * H) * 4
    demand = 2 * (weight_bytes + ctx_bytes + tile_bytes) + work_bytes + (1 << 20)
    try:
        cap = int(0.85 * pltpu.get_tpu_info().vmem_capacity_bytes)
    except Exception:
        cap = 64 * 1024 * 1024     # conservative (v7x-safe) fallback
    vmem_limit = int(min(cap, max(demand, 16 * 1024 * 1024)))

    flops = 2 * B * T_pad * (N_pad * (C + 1) + D * H
                             + C * n_blocks * H + n_blocks * 2 * H * H + H)
    cost = pl.CostEstimate(
        flops=int(flops),
        transcendentals=int(B * T_pad * N_pad),
        bytes_accessed=int(B * T_pad * D * 4 + B * nT * ctx_bytes
                           + weight_bytes + B * T_pad * 4))

    out = pl.pallas_call(
        kernel,
        out_shape=jax.ShapeDtypeStruct((B, 1, T_pad), jnp.float32),
        grid_spec=pltpu.PrefetchScalarGridSpec(
            num_scalar_prefetch=0,
            grid=(B, nT),
            in_specs=[
                pl.BlockSpec((1, TT, D), lambda b, t: (b, t, 0)),        # p tile
                pl.BlockSpec((1, D, N_pad), lambda b, t: (b, 0, 0)),     # pp^T
                pl.BlockSpec((1, C + 1, N_pad), lambda b, t: (b, 0, 0)), # fea^T + 1s
            ] + [_resident(w) for w in weights],
            out_specs=pl.BlockSpec((1, 1, TT), lambda b, t: (b, 0, t)),
        ),
        compiler_params=pltpu.CompilerParams(
            dimension_semantics=("parallel", "parallel"),
            vmem_limit_bytes=vmem_limit),
        cost_estimate=cost,
    )(p, pp_t, fea_aug, *weights)

    return out.reshape(B, T_pad)[:, :T]


# ----------------------------- reference (pure JAX) ---------------------------

def reference(p, pp, fea, params, *, n_blocks, var, matmul_dtype=jnp.float32):
    """Pure-JAX forward matching the PyTorch module.  matmul_dtype=bfloat16
    mirrors the kernel's mixed-precision MXU policy (f32 accumulation)."""
    md = matmul_dtype

    def mdot(a, b):
        return jnp.dot(a.astype(md), b.astype(md),
                       preferred_element_type=jnp.float32)

    diff = pp[:, None, :, :] - p[:, :, None, :]          # (B, T, N, D)
    nrm = jnp.sqrt(jnp.sum(diff * diff, axis=3))
    w = jnp.exp(-((nrm + 1e-5) ** 2) / var)
    w = w / jnp.sum(w, axis=2, keepdims=True)
    c = jnp.einsum("btn,bnc->btc", w.astype(md), fea.astype(md),
                   preferred_element_type=jnp.float32)

    net = mdot(p, params["wp"].T) + params["bp"]
    for i in range(n_blocks):
        net = net + mdot(c, params["wc"][i].T) + params["bc"][i]
        h = mdot(jax.nn.relu(net), params["w0"][i].T) + params["b0"][i]
        dx = mdot(jax.nn.relu(h), params["w1"][i].T) + params["b1"][i]
        net = net + dx
    out = mdot(jax.nn.relu(net), params["wout"].T) + params["bout"]
    return out[..., 0]


# ----------------------------- main -------------------------------------------

if __name__ == "__main__":
    # Small shapes consistent with the module.
    B, T, N = 2, 8, 16          # batch, query points, context points
    DIM, C_DIM, H = 3, 32, 64   # input dim, latent code dim, hidden size
    N_BLOCKS = 5
    GAUSSIAN_VAL = 0.2
    VAR = GAUSSIAN_VAL ** 2

    key = jax.random.PRNGKey(0)
    keys = jax.random.split(key, 16)

    p = jax.random.uniform(keys[0], (B, T, DIM), jnp.float32, -0.5, 0.5)
    pp = jax.random.uniform(keys[1], (B, N, DIM), jnp.float32, -0.5, 0.5)
    fea = jax.random.normal(keys[2], (B, N, C_DIM), jnp.float32)

    # Parameters in nn.Linear layout: weight (out, in), bias (out,).
    params = {
        "wp":   0.1 * jax.random.normal(keys[3], (H, DIM), jnp.float32),
        "bp":   0.05 * jax.random.normal(keys[4], (H,), jnp.float32),
        "wc":   0.1 * jax.random.normal(keys[5], (N_BLOCKS, H, C_DIM), jnp.float32),
        "bc":   0.05 * jax.random.normal(keys[6], (N_BLOCKS, H), jnp.float32),
        "w0":   0.1 * jax.random.normal(keys[7], (N_BLOCKS, H, H), jnp.float32),
        "b0":   0.05 * jax.random.normal(keys[8], (N_BLOCKS, H), jnp.float32),
        "w1":   0.1 * jax.random.normal(keys[9], (N_BLOCKS, H, H), jnp.float32),
        "b1":   0.05 * jax.random.normal(keys[10], (N_BLOCKS, H), jnp.float32),
        "wout": 0.1 * jax.random.normal(keys[11], (1, H), jnp.float32),
        "bout": 0.05 * jax.random.normal(keys[12], (1,), jnp.float32),
    }

    out = local_point_decoder(p, pp, fea, params, n_blocks=N_BLOCKS, var=VAR)
    out = jax.block_until_ready(out)
    assert out.shape == (B, T), out.shape

    # Check against a reference that mirrors the kernel's bf16-matmul / f32-acc
    # policy (tight), and against the full-f32 module semantics (looser).
    ref_mp = reference(p, pp, fea, params, n_blocks=N_BLOCKS, var=VAR,
                       matmul_dtype=jnp.bfloat16)
    assert jnp.allclose(out, ref_mp, rtol=2e-2, atol=2e-2), (out, ref_mp)

    ref_f32 = reference(p, pp, fea, params, n_blocks=N_BLOCKS, var=VAR)
    assert jnp.allclose(out, ref_f32, rtol=1e-1, atol=1e-1), (out, ref_f32)

    # TODO(synk): the n_points >= 30000 host-side chunked path (torch.split over
    # 10k-point slices) is a memory workaround; the T-tiled grid subsumes it.
    print("KERNEL_OK")
</pallas_src>

<mosaic_0001>
module attributes {stable_mosaic.version = 11 : i64} {
  func.func @_decoder_kernel(%arg0: i32, %arg1: i32, %arg2: memref<1x8x3xf32, #tpu.memory_space<vmem>>, %arg3: memref<1x3x128xf32, #tpu.memory_space<vmem>>, %arg4: memref<1x33x128xbf16, #tpu.memory_space<vmem>>, %arg5: memref<3x64xbf16, #tpu.memory_space<vmem>>, %arg6: memref<1x64xf32, #tpu.memory_space<vmem>>, %arg7: memref<32x320xbf16, #tpu.memory_space<vmem>>, %arg8: memref<5x1x64xf32, #tpu.memory_space<vmem>>, %arg9: memref<5x64x64xbf16, #tpu.memory_space<vmem>>, %arg10: memref<5x1x64xf32, #tpu.memory_space<vmem>>, %arg11: memref<5x64x64xbf16, #tpu.memory_space<vmem>>, %arg12: memref<5x1x64xf32, #tpu.memory_space<vmem>>, %arg13: memref<1x64xbf16, #tpu.memory_space<vmem>>, %arg14: memref<1x1xf32, #tpu.memory_space<vmem>>, %arg15: memref<1x1x8xf32, #tpu.memory_space<vmem>>) attributes {dimension_semantics = [#tpu.dimension_semantics<parallel>, #tpu.dimension_semantics<parallel>], iteration_bounds = array<i64: 2, 1>, scalar_prefetch = 0 : i64, scratch_operands = 0 : i64, tpu.core_type = #tpu.core_type<tc>, window_params = [{transform_indices = @transform_0, window_bounds = array<i64: 1, 8, 3>}, {transform_indices = @transform_1, window_bounds = array<i64: 1, 3, 128>}, {transform_indices = @transform_2, window_bounds = array<i64: 1, 33, 128>}, {pipeline_mode = #tpu.pipeline_mode<synchronous>, transform_indices = @transform_3, window_bounds = array<i64: 3, 64>}, {pipeline_mode = #tpu.pipeline_mode<synchronous>, transform_indices = @transform_4, window_bounds = array<i64: 1, 64>}, {pipeline_mode = #tpu.pipeline_mode<synchronous>, transform_indices = @transform_5, window_bounds = array<i64: 32, 320>}, {pipeline_mode = #tpu.pipeline_mode<synchronous>, transform_indices = @transform_6, window_bounds = array<i64: 5, 1, 64>}, {pipeline_mode = #tpu.pipeline_mode<synchronous>, transform_indices = @transform_7, window_bounds = array<i64: 5, 64, 64>}, {pipeline_mode = #tpu.pipeline_mode<synchronous>, transform_indices = @transform_8, window_bounds = array<i64: 5, 1, 64>}, {pipeline_mode = #tpu.pipeline_mode<synchronous>, transform_indices = @transform_9, window_bounds = array<i64: 5, 64, 64>}, {pipeline_mode = #tpu.pipeline_mode<synchronous>, transform_indices = @transform_10, window_bounds = array<i64: 5, 1, 64>}, {pipeline_mode = #tpu.pipeline_mode<synchronous>, transform_indices = @transform_11, window_bounds = array<i64: 1, 64>}, {pipeline_mode = #tpu.pipeline_mode<synchronous>, transform_indices = @transform_12, window_bounds = array<i64: 1, 1>}, {transform_indices = @transform_13, window_bounds = array<i64: 1, 1, 8>}]} {
    %c0 = arith.constant 0 : index
    %c0_0 = arith.constant 0 : index
    %c0_1 = arith.constant 0 : index
    %0 = vector.load %arg2[%c0, %c0_0, %c0_1] : memref<1x8x3xf32, #tpu.memory_space<vmem>>, vector<1x8x3xf32>
    %1 = vector.shape_cast %0 : vector<1x8x3xf32> to vector<8x3xf32>
    %cst = arith.constant 0.000000e+00 : f32
    %2 = vector.broadcast %cst : f32 to vector<8x33xf32>
    %c0_2 = arith.constant 0 : index
    %c0_3 = arith.constant 0 : index
    %c0_4 = arith.constant 0 : index
    %3 = vector.load %arg3[%c0_2, %c0_3, %c0_4] : memref<1x3x128xf32, #tpu.memory_space<vmem>>, vector<1x3x128xf32>
    %4 = vector.shape_cast %3 : vector<1x3x128xf32> to vector<3x128xf32>
    %c0_5 = arith.constant 0 : index
    %c0_6 = arith.constant 0 : index
    %c0_7 = arith.constant 0 : index
    %5 = vector.load %arg4[%c0_5, %c0_6, %c0_7] : memref<1x33x128xbf16, #tpu.memory_space<vmem>>, vector<1x33x128xbf16>
    %6 = vector.shape_cast %5 : vector<1x33x128xbf16> to vector<33x128xbf16>
    %7 = vector.extract_strided_slice %1 {offsets = [0, 0], sizes = [8, 1], strides = [1, 1]} : vector<8x3xf32> to vector<8x1xf32>
    %8 = vector.extract_strided_slice %4 {offsets = [0, 0], sizes = [1, 128], strides = [1, 1]} : vector<3x128xf32> to vector<1x128xf32>
    %9 = vector.broadcast %7 : vector<8x1xf32> to vector<8x128xf32>
    %10 = vector.broadcast %8 : vector<1x128xf32> to vector<8x128xf32>
    %11 = arith.subf %9, %10 : vector<8x128xf32>
    %12 = arith.mulf %11, %11 : vector<8x128xf32>
    %13 = vector.extract_strided_slice %1 {offsets = [0, 1], sizes = [8, 1], strides = [1, 1]} : vector<8x3xf32> to vector<8x1xf32>
    %14 = vector.extract_strided_slice %4 {offsets = [1, 0], sizes = [1, 128], strides = [1, 1]} : vector<3x128xf32> to vector<1x128xf32>
    %15 = vector.broadcast %13 : vector<8x1xf32> to vector<8x128xf32>
    %16 = vector.broadcast %14 : vector<1x128xf32> to vector<8x128xf32>
    %17 = arith.subf %15, %16 : vector<8x128xf32>
    %18 = arith.mulf %17, %17 : vector<8x128xf32>
    %19 = arith.addf %12, %18 : vector<8x128xf32>
    %20 = vector.extract_strided_slice %1 {offsets = [0, 2], sizes = [8, 1], strides = [1, 1]} : vector<8x3xf32> to vector<8x1xf32>
    %21 = vector.extract_strided_slice %4 {offsets = [2, 0], sizes = [1, 128], strides = [1, 1]} : vector<3x128xf32> to vector<1x128xf32>
    %22 = vector.broadcast %20 : vector<8x1xf32> to vector<8x128xf32>
    %23 = vector.broadcast %21 : vector<1x128xf32> to vector<8x128xf32>
    %24 = arith.subf %22, %23 : vector<8x128xf32>
    %25 = arith.mulf %24, %24 : vector<8x128xf32>
    %26 = arith.addf %19, %25 : vector<8x128xf32>
    %cst_8 = arith.constant -2.500000e+01 : f32
    %27 = vector.broadcast %cst_8 : f32 to vector<8x128xf32>
    %28 = arith.mulf %26, %27 : vector<8x128xf32>
    %29 = math.exp %28 : vector<8x128xf32>
    %30 = arith.truncf %29 : vector<8x128xf32> to vector<8x128xbf16>
    %cst_9 = arith.constant dense<0.000000e+00> : vector<8x33xf32>
    %31 = tpu.matmul %30, %6, %cst_9 {dimension_numbers = #tpu.dot_dimension_numbers<[1], [1], [0], [0], [0, 0, 1, 0], [], []>} : vector<8x128xbf16>, vector<33x128xbf16>, vector<8x33xf32> -> vector<8x33xf32>
    %32 = arith.addf %2, %31 : vector<8x33xf32>
    %33 = vector.extract_strided_slice %32 {offsets = [0, 32], sizes = [8, 1], strides = [1, 1]} : vector<8x33xf32> to vector<8x1xf32>
    %cst_10 = arith.constant 1.000000e-30 : f32
    %34 = vector.broadcast %cst_10 : f32 to vector<8x1xf32>
    %35 = arith.maximumf %33, %34 : vector<8x1xf32>
    %36 = vector.extract_strided_slice %32 {offsets = [0, 0], sizes = [8, 32], strides = [1, 1]} : vector<8x33xf32> to vector<8x32xf32>
    %37 = tpu.reciprocal %35 {approx = true} : vector<8x1xf32> -> vector<8x1xf32>
    %38 = vector.broadcast %37 : vector<8x1xf32> to vector<8x32xf32>
    %39 = arith.mulf %36, %38 : vector<8x32xf32>
    %40 = arith.truncf %1 : vector<8x3xf32> to vector<8x3xbf16>
    %c0_11 = arith.constant 0 : index
    %c0_12 = arith.constant 0 : index
    %41 = vector.load %arg5[%c0_11, %c0_12] : memref<3x64xbf16, #tpu.memory_space<vmem>>, vector<3x64xbf16>
    %cst_13 = arith.constant dense<0.000000e+00> : vector<8x64xf32>
    %42 = tpu.matmul %40, %41, %cst_13 {dimension_numbers = #tpu.dot_dimension_numbers<[1], [0], [0], [1], [0, 0, 1, 1], [], []>} : vector<8x3xbf16>, vector<3x64xbf16>, vector<8x64xf32> -> vector<8x64xf32>
    %c0_14 = arith.constant 0 : index
    %c0_15 = arith.constant 0 : index
    %43 = vector.load %arg6[%c0_14, %c0_15] : memref<1x64xf32, #tpu.memory_space<vmem>>, vector<1x64xf32>
    %44 = vector.broadcast %43 : vector<1x64xf32> to vector<8x64xf32>
    %45 = arith.addf %42, %44 : vector<8x64xf32>
    %46 = arith.truncf %39 : vector<8x32xf32> to vector<8x32xbf16>
    %c0_16 = arith.constant 0 : index
    %c0_17 = arith.constant 0 : index
    %47 = vector.load %arg7[%c0_16, %c0_17] : memref<32x320xbf16, #tpu.memory_space<vmem>>, vector<32x320xbf16>
    %cst_18 = arith.constant dense<0.000000e+00> : vector<8x320xf32>
    %48 = tpu.matmul %46, %47, %cst_18 {dimension_numbers = #tpu.dot_dimension_numbers<[1], [0], [0], [1], [0, 0, 1, 1], [], []>} : vector<8x32xbf16>, vector<32x320xbf16>, vector<8x320xf32> -> vector<8x320xf32>
    %49 = vector.extract_strided_slice %48 {offsets = [0, 0], sizes = [8, 64], strides = [1, 1]} : vector<8x320xf32> to vector<8x64xf32>
    %50 = arith.addf %45, %49 : vector<8x64xf32>
    %c0_19 = arith.constant 0 : index
    %c0_20 = arith.constant 0 : index
    %c0_21 = arith.constant 0 : index
    %51 = vector.load %arg8[%c0_19, %c0_20, %c0_21] : memref<5x1x64xf32, #tpu.memory_space<vmem>>, vector<1x1x64xf32>
    %52 = vector.shape_cast %51 : vector<1x1x64xf32> to vector<1x64xf32>
    %53 = vector.broadcast %52 : vector<1x64xf32> to vector<8x64xf32>
    %54 = arith.addf %50, %53 : vector<8x64xf32>
    %cst_22 = arith.constant 0.000000e+00 : f32
    %55 = vector.broadcast %cst_22 : f32 to vector<8x64xf32>
    %56 = arith.maximumf %54, %55 : vector<8x64xf32>
    %57 = arith.truncf %56 : vector<8x64xf32> to vector<8x64xbf16>
    %c0_23 = arith.constant 0 : index
    %c0_24 = arith.constant 0 : index
    %c0_25 = arith.constant 0 : index
    %58 = vector.load %arg9[%c0_23, %c0_24, %c0_25] : memref<5x64x64xbf16, #tpu.memory_space<vmem>>, vector<1x64x64xbf16>
    %59 = vector.shape_cast %58 : vector<1x64x64xbf16> to vector<64x64xbf16>
    %cst_26 = arith.constant dense<0.000000e+00> : vector<8x64xf32>
    %60 = tpu.matmul %57, %59, %cst_26 {dimension_numbers = #tpu.dot_dimension_numbers<[1], [0], [0], [1], [0, 0, 1, 1], [], []>} : vector<8x64xbf16>, vector<64x64xbf16>, vector<8x64xf32> -> vector<8x64xf32>
    %c0_27 = arith.constant 0 : index
    %c0_28 = arith.constant 0 : index
    %c0_29 = arith.constant 0 : index
    %61 = vector.load %arg10[%c0_27, %c0_28, %c0_29] : memref<5x1x64xf32, #tpu.memory_space<vmem>>, vector<1x1x64xf32>
    %62 = vector.shape_cast %61 : vector<1x1x64xf32> to vector<1x64xf32>
    %63 = vector.broadcast %62 : vector<1x64xf32> to vector<8x64xf32>
    %64 = arith.addf %60, %63 : vector<8x64xf32>
    %cst_30 = arith.constant 0.000000e+00 : f32
    %65 = vector.broadcast %cst_30 : f32 to vector<8x64xf32>
    %66 = arith.maximumf %64, %65 : vector<8x64xf32>
    %67 = arith.truncf %66 : vector<8x64xf32> to vector<8x64xbf16>
    %c0_31 = arith.constant 0 : index
    %c0_32 = arith.constant 0 : index
    %c0_33 = arith.constant 0 : index
    %68 = vector.load %arg11[%c0_31, %c0_32, %c0_33] : memref<5x64x64xbf16, #tpu.memory_space<vmem>>, vector<1x64x64xbf16>
    %69 = vector.shape_cast %68 : vector<1x64x64xbf16> to vector<64x64xbf16>
    %cst_34 = arith.constant dense<0.000000e+00> : vector<8x64xf32>
    %70 = tpu.matmul %67, %69, %cst_34 {dimension_numbers = #tpu.dot_dimension_numbers<[1], [0], [0], [1], [0, 0, 1, 1], [], []>} : vector<8x64xbf16>, vector<64x64xbf16>, vector<8x64xf32> -> vector<8x64xf32>
    %c0_35 = arith.constant 0 : index
    %c0_36 = arith.constant 0 : index
    %c0_37 = arith.constant 0 : index
    %71 = vector.load %arg12[%c0_35, %c0_36, %c0_37] : memref<5x1x64xf32, #tpu.memory_space<vmem>>, vector<1x1x64xf32>
    %72 = vector.shape_cast %71 : vector<1x1x64xf32> to vector<1x64xf32>
    %73 = vector.broadcast %72 : vector<1x64xf32> to vector<8x64xf32>
    %74 = arith.addf %70, %73 : vector<8x64xf32>
    %75 = arith.addf %54, %74 : vector<8x64xf32>
    %76 = vector.extract_strided_slice %48 {offsets = [0, 64], sizes = [8, 64], strides = [1, 1]} : vector<8x320xf32> to vector<8x64xf32>
    %77 = arith.addf %75, %76 : vector<8x64xf32>
    %c1 = arith.constant 1 : index
    %c0_38 = arith.constant 0 : index
    %c0_39 = arith.constant 0 : index
    %78 = vector.load %arg8[%c1, %c0_38, %c0_39] : memref<5x1x64xf32, #tpu.memory_space<vmem>>, vector<1x1x64xf32>
    %79 = vector.shape_cast %78 : vector<1x1x64xf32> to vector<1x64xf32>
    %80 = vector.broadcast %79 : vector<1x64xf32> to vector<8x64xf32>
    %81 = arith.addf %77, %80 : vector<8x64xf32>
    %cst_40 = arith.constant 0.000000e+00 : f32
    %82 = vector.broadcast %cst_40 : f32 to vector<8x64xf32>
    %83 = arith.maximumf %81, %82 : vector<8x64xf32>
    %84 = arith.truncf %83 : vector<8x64xf32> to vector<8x64xbf16>
    %c1_41 = arith.constant 1 : index
    %c0_42 = arith.constant 0 : index
    %c0_43 = arith.constant 0 : index
    %85 = vector.load %arg9[%c1_41, %c0_42, %c0_43] : memref<5x64x64xbf16, #tpu.memory_space<vmem>>, vector<1x64x64xbf16>
    %86 = vector.shape_cast %85 : vector<1x64x64xbf16> to vector<64x64xbf16>
    %cst_44 = arith.constant dense<0.000000e+00> : vector<8x64xf32>
    %87 = tpu.matmul %84, %86, %cst_44 {dimension_numbers = #tpu.dot_dimension_numbers<[1], [0], [0], [1], [0, 0, 1, 1], [], []>} : vector<8x64xbf16>, vector<64x64xbf16>, vector<8x64xf32> -> vector<8x64xf32>
    %c1_45 = arith.constant 1 : index
    %c0_46 = arith.constant 0 : index
    %c0_47 = arith.constant 0 : index
    %88 = vector.load %arg10[%c1_45, %c0_46, %c0_47] : memref<5x1x64xf32, #tpu.memory_space<vmem>>, vector<1x1x64xf32>
    %89 = vector.shape_cast %88 : vector<1x1x64xf32> to vector<1x64xf32>
    %90 = vector.broadcast %89 : vector<1x64xf32> to vector<8x64xf32>
    %91 = arith.addf %87, %90 : vector<8x64xf32>
    %cst_48 = arith.constant 0.000000e+00 : f32
    %92 = vector.broadcast %cst_48 : f32 to vector<8x64xf32>
    %93 = arith.maximumf %91, %92 : vector<8x64xf32>
    %94 = arith.truncf %93 : vector<8x64xf32> to vector<8x64xbf16>
    %c1_49 = arith.constant 1 : index
    %c0_50 = arith.constant 0 : index
    %c0_51 = arith.constant 0 : index
    %95 = vector.load %arg11[%c1_49, %c0_50, %c0_51] : memref<5x64x64xbf16, #tpu.memory_space<vmem>>, vector<1x64x64xbf16>
    %96 = vector.shape_cast %95 : vector<1x64x64xbf16> to vector<64x64xbf16>
    %cst_52 = arith.constant dense<0.000000e+00> : vector<8x64xf32>
    %97 = tpu.matmul %94, %96, %cst_52 {dimension_numbers = #tpu.dot_dimension_numbers<[1], [0], [0], [1], [0, 0, 1, 1], [], []>} : vector<8x64xbf16>, vector<64x64xbf16>, vector<8x64xf32> -> vector<8x64xf32>
    %c1_53 = arith.constant 1 : index
    %c0_54 = arith.constant 0 : index
    %c0_55 = arith.constant 0 : index
    %98 = vector.load %arg12[%c1_53, %c0_54, %c0_55] : memref<5x1x64xf32, #tpu.memory_space<vmem>>, vector<1x1x64xf32>
    %99 = vector.shape_cast %98 : vector<1x1x64xf32> to vector<1x64xf32>
    %100 = vector.broadcast %99 : vector<1x64xf32> to vector<8x64xf32>
    %101 = arith.addf %97, %100 : vector<8x64xf32>
    %102 = arith.addf %81, %101 : vector<8x64xf32>
    %103 = vector.extract_strided_slice %48 {offsets = [0, 128], sizes = [8, 64], strides = [1, 1]} : vector<8x320xf32> to vector<8x64xf32>
    %104 = arith.addf %102, %103 : vector<8x64xf32>
    %c2 = arith.constant 2 : index
    %c0_56 = arith.constant 0 : index
    %c0_57 = arith.constant 0 : index
    %105 = vector.load %arg8[%c2, %c0_56, %c0_57] : memref<5x1x64xf32, #tpu.memory_space<vmem>>, vector<1x1x64xf32>
    %106 = vector.shape_cast %105 : vector<1x1x64xf32> to vector<1x64xf32>
    %107 = vector.broadcast %106 : vector<1x64xf32> to vector<8x64xf32>
    %108 = arith.addf %104, %107 : vector<8x64xf32>
    %cst_58 = arith.constant 0.000000e+00 : f32
    %109 = vector.broadcast %cst_58 : f32 to vector<8x64xf32>
    %110 = arith.maximumf %108, %109 : vector<8x64xf32>
    %111 = arith.truncf %110 : vector<8x64xf32> to vector<8x64xbf16>
    %c2_59 = arith.constant 2 : index
    %c0_60 = arith.constant 0 : index
    %c0_61 = arith.constant 0 : index
    %112 = vector.load %arg9[%c2_59, %c0_60, %c0_61] : memref<5x64x64xbf16, #tpu.memory_space<vmem>>, vector<1x64x64xbf16>
    %113 = vector.shape_cast %112 : vector<1x64x64xbf16> to vector<64x64xbf16>
    %cst_62 = arith.constant dense<0.000000e+00> : vector<8x64xf32>
    %114 = tpu.matmul %111, %113, %cst_62 {dimension_numbers = #tpu.dot_dimension_numbers<[1], [0], [0], [1], [0, 0, 1, 1], [], []>} : vector<8x64xbf16>, vector<64x64xbf16>, vector<8x64xf32> -> vector<8x64xf32>
    %c2_63 = arith.constant 2 : index
    %c0_64 = arith.constant 0 : index
    %c0_65 = arith.constant 0 : index
    %115 = vector.load %arg10[%c2_63, %c0_64, %c0_65] : memref<5x1x64xf32, #tpu.memory_space<vmem>>, vector<1x1x64xf32>
    %116 = vector.shape_cast %115 : vector<1x1x64xf32> to vector<1x64xf32>
    %117 = vector.broadcast %116 : vector<1x64xf32> to vector<8x64xf32>
    %118 = arith.addf %114, %117 : vector<8x64xf32>
    %cst_66 = arith.constant 0.000000e+00 : f32
    %119 = vector.broadcast %cst_66 : f32 to vector<8x64xf32>
    %120 = arith.maximumf %118, %119 : vector<8x64xf32>
    %121 = arith.truncf %120 : vector<8x64xf32> to vector<8x64xbf16>
    %c2_67 = arith.constant 2 : index
    %c0_68 = arith.constant 0 : index
    %c0_69 = arith.constant 0 : index
    %122 = vector.load %arg11[%c2_67, %c0_68, %c0_69] : memref<5x64x64xbf16, #tpu.memory_space<vmem>>, vector<1x64x64xbf16>
    %123 = vector.shape_cast %122 : vector<1x64x64xbf16> to vector<64x64xbf16>
    %cst_70 = arith.constant dense<0.000000e+00> : vector<8x64xf32>
    %124 = tpu.matmul %121, %123, %cst_70 {dimension_numbers = #tpu.dot_dimension_numbers<[1], [0], [0], [1], [0, 0, 1, 1], [], []>} : vector<8x64xbf16>, vector<64x64xbf16>, vector<8x64xf32> -> vector<8x64xf32>
    %c2_71 = arith.constant 2 : index
    %c0_72 = arith.constant 0 : index
    %c0_73 = arith.constant 0 : index
    %125 = vector.load %arg12[%c2_71, %c0_72, %c0_73] : memref<5x1x64xf32, #tpu.memory_space<vmem>>, vector<1x1x64xf32>
    %126 = vector.shape_cast %125 : vector<1x1x64xf32> to vector<1x64xf32>
    %127 = vector.broadcast %126 : vector<1x64xf32> to vector<8x64xf32>
    %128 = arith.addf %124, %127 : vector<8x64xf32>
    %129 = arith.addf %108, %128 : vector<8x64xf32>
    %130 = vector.extract_strided_slice %48 {offsets = [0, 192], sizes = [8, 64], strides = [1, 1]} : vector<8x320xf32> to vector<8x64xf32>
    %131 = arith.addf %129, %130 : vector<8x64xf32>
    %c3 = arith.constant 3 : index
    %c0_74 = arith.constant 0 : index
    %c0_75 = arith.constant 0 : index
    %132 = vector.load %arg8[%c3, %c0_74, %c0_75] : memref<5x1x64xf32, #tpu.memory_space<vmem>>, vector<1x1x64xf32>
    %133 = vector.shape_cast %132 : vector<1x1x64xf32> to vector<1x64xf32>
    %134 = vector.broadcast %133 : vector<1x64xf32> to vector<8x64xf32>
    %135 = arith.addf %131, %134 : vector<8x64xf32>
    %cst_76 = arith.constant 0.000000e+00 : f32
    %136 = vector.broadcast %cst_76 : f32 to vector<8x64xf32>
    %137 = arith.maximumf %135, %136 : vector<8x64xf32>
    %138 = arith.truncf %137 : vector<8x64xf32> to vector<8x64xbf16>
    %c3_77 = arith.constant 3 : index
    %c0_78 = arith.constant 0 : index
    %c0_79 = arith.constant 0 : index
    %139 = vector.load %arg9[%c3_77, %c0_78, %c0_79] : memref<5x64x64xbf16, #tpu.memory_space<vmem>>, vector<1x64x64xbf16>
    %140 = vector.shape_cast %139 : vector<1x64x64xbf16> to vector<64x64xbf16>
    %cst_80 = arith.constant dense<0.000000e+00> : vector<8x64xf32>
    %141 = tpu.matmul %138, %140, %cst_80 {dimension_numbers = #tpu.dot_dimension_numbers<[1], [0], [0], [1], [0, 0, 1, 1], [], []>} : vector<8x64xbf16>, vector<64x64xbf16>, vector<8x64xf32> -> vector<8x64xf32>
    %c3_81 = arith.constant 3 : index
    %c0_82 = arith.constant 0 : index
    %c0_83 = arith.constant 0 : index
    %142 = vector.load %arg10[%c3_81, %c0_82, %c0_83] : memref<5x1x64xf32, #tpu.memory_space<vmem>>, vector<1x1x64xf32>
    %143 = vector.shape_cast %142 : vector<1x1x64xf32> to vector<1x64xf32>
    %144 = vector.broadcast %143 : vector<1x64xf32> to vector<8x64xf32>
    %145 = arith.addf %141, %144 : vector<8x64xf32>
    %cst_84 = arith.constant 0.000000e+00 : f32
    %146 = vector.broadcast %cst_84 : f32 to vector<8x64xf32>
    %147 = arith.maximumf %145, %146 : vector<8x64xf32>
    %148 = arith.truncf %147 : vector<8x64xf32> to vector<8x64xbf16>
    %c3_85 = arith.constant 3 : index
    %c0_86 = arith.constant 0 : index
    %c0_87 = arith.constant 0 : index
    %149 = vector.load %arg11[%c3_85, %c0_86, %c0_87] : memref<5x64x64xbf16, #tpu.memory_space<vmem>>, vector<1x64x64xbf16>
    %150 = vector.shape_cast %149 : vector<1x64x64xbf16> to vector<64x64xbf16>
    %cst_88 = arith.constant dense<0.000000e+00> : vector<8x64xf32>
    %151 = tpu.matmul %148, %150, %cst_88 {dimension_numbers = #tpu.dot_dimension_numbers<[1], [0], [0], [1], [0, 0, 1, 1], [], []>} : vector<8x64xbf16>, vector<64x64xbf16>, vector<8x64xf32> -> vector<8x64xf32>
    %c3_89 = arith.constant 3 : index
    %c0_90 = arith.constant 0 : index
    %c0_91 = arith.constant 0 : index
    %152 = vector.load %arg12[%c3_89, %c0_90, %c0_91] : memref<5x1x64xf32, #tpu.memory_space<vmem>>, vector<1x1x64xf32>
    %153 = vector.shape_cast %152 : vector<1x1x64xf32> to vector<1x64xf32>
    %154 = vector.broadcast %153 : vector<1x64xf32> to vector<8x64xf32>
    %155 = arith.addf %151, %154 : vector<8x64xf32>
    %156 = arith.addf %135, %155 : vector<8x64xf32>
    %157 = vector.extract_strided_slice %48 {offsets = [0, 256], sizes = [8, 64], strides = [1, 1]} : vector<8x320xf32> to vector<8x64xf32>
    %158 = arith.addf %156, %157 : vector<8x64xf32>
    %c4 = arith.constant 4 : index
    %c0_92 = arith.constant 0 : index
    %c0_93 = arith.constant 0 : index
    %159 = vector.load %arg8[%c4, %c0_92, %c0_93] : memref<5x1x64xf32, #tpu.memory_space<vmem>>, vector<1x1x64xf32>
    %160 = vector.shape_cast %159 : vector<1x1x64xf32> to vector<1x64xf32>
    %161 = vector.broadcast %160 : vector<1x64xf32> to vector<8x64xf32>
    %162 = arith.addf %158, %161 : vector<8x64xf32>
    %cst_94 = arith.constant 0.000000e+00 : f32
    %163 = vector.broadcast %cst_94 : f32 to vector<8x64xf32>
    %164 = arith.maximumf %162, %163 : vector<8x64xf32>
    %165 = arith.truncf %164 : vector<8x64xf32> to vector<8x64xbf16>
    %c4_95 = arith.constant 4 : index
    %c0_96 = arith.constant 0 : index
    %c0_97 = arith.constant 0 : index
    %166 = vector.load %arg9[%c4_95, %c0_96, %c0_97] : memref<5x64x64xbf16, #tpu.memory_space<vmem>>, vector<1x64x64xbf16>
    %167 = vector.shape_cast %166 : vector<1x64x64xbf16> to vector<64x64xbf16>
    %cst_98 = arith.constant dense<0.000000e+00> : vector<8x64xf32>
    %168 = tpu.matmul %165, %167, %cst_98 {dimension_numbers = #tpu.dot_dimension_numbers<[1], [0], [0], [1], [0, 0, 1, 1], [], []>} : vector<8x64xbf16>, vector<64x64xbf16>, vector<8x64xf32> -> vector<8x64xf32>
    %c4_99 = arith.constant 4 : index
    %c0_100 = arith.constant 0 : index
    %c0_101 = arith.constant 0 : index
    %169 = vector.load %arg10[%c4_99, %c0_100, %c0_101] : memref<5x1x64xf32, #tpu.memory_space<vmem>>, vector<1x1x64xf32>
    %170 = vector.shape_cast %169 : vector<1x1x64xf32> to vector<1x64xf32>
    %171 = vector.broadcast %170 : vector<1x64xf32> to vector<8x64xf32>
    %172 = arith.addf %168, %171 : vector<8x64xf32>
    %cst_102 = arith.constant 0.000000e+00 : f32
    %173 = vector.broadcast %cst_102 : f32 to vector<8x64xf32>
    %174 = arith.maximumf %172, %173 : vector<8x64xf32>
    %175 = arith.truncf %174 : vector<8x64xf32> to vector<8x64xbf16>
    %c4_103 = arith.constant 4 : index
    %c0_104 = arith.constant 0 : index
    %c0_105 = arith.constant 0 : index
    %176 = vector.load %arg11[%c4_103, %c0_104, %c0_105] : memref<5x64x64xbf16, #tpu.memory_space<vmem>>, vector<1x64x64xbf16>
    %177 = vector.shape_cast %176 : vector<1x64x64xbf16> to vector<64x64xbf16>
    %cst_106 = arith.constant dense<0.000000e+00> : vector<8x64xf32>
    %178 = tpu.matmul %175, %177, %cst_106 {dimension_numbers = #tpu.dot_dimension_numbers<[1], [0], [0], [1], [0, 0, 1, 1], [], []>} : vector<8x64xbf16>, vector<64x64xbf16>, vector<8x64xf32> -> vector<8x64xf32>
    %c4_107 = arith.constant 4 : index
    %c0_108 = arith.constant 0 : index
    %c0_109 = arith.constant 0 : index
    %179 = vector.load %arg12[%c4_107, %c0_108, %c0_109] : memref<5x1x64xf32, #tpu.memory_space<vmem>>, vector<1x1x64xf32>
    %180 = vector.shape_cast %179 : vector<1x1x64xf32> to vector<1x64xf32>
    %181 = vector.broadcast %180 : vector<1x64xf32> to vector<8x64xf32>
    %182 = arith.addf %178, %181 : vector<8x64xf32>
    %183 = arith.addf %162, %182 : vector<8x64xf32>
    %c0_110 = arith.constant 0 : index
    %c0_111 = arith.constant 0 : index
    %184 = vector.load %arg13[%c0_110, %c0_111] : memref<1x64xbf16, #tpu.memory_space<vmem>>, vector<1x64xbf16>
    %cst_112 = arith.constant 0.000000e+00 : f32
    %185 = vector.broadcast %cst_112 : f32 to vector<8x64xf32>
    %186 = arith.maximumf %183, %185 : vector<8x64xf32>
    %187 = arith.truncf %186 : vector<8x64xf32> to vector<8x64xbf16>
    %cst_113 = arith.constant dense<0.000000e+00> : vector<1x8xf32>
    %188 = tpu.matmul %184, %187, %cst_113 {dimension_numbers = #tpu.dot_dimension_numbers<[1], [1], [0], [0], [0, 0, 1, 0], [], []>} : vector<1x64xbf16>, vector<8x64xbf16>, vector<1x8xf32> -> vector<1x8xf32>
    %c0_114 = arith.constant 0 : index
    %c0_115 = arith.constant 0 : index
    %189 = vector.load %arg14[%c0_114, %c0_115] : memref<1x1xf32, #tpu.memory_space<vmem>>, vector<1x1xf32>
    %190 = vector.broadcast %189 : vector<1x1xf32> to vector<1x8xf32>
    %191 = arith.addf %188, %190 : vector<1x8xf32>
    %c0_116 = arith.constant 0 : index
    %c0_117 = arith.constant 0 : index
    %c0_118 = arith.constant 0 : index
    %192 = vector.load %arg15[%c0_116, %c0_117, %c0_118] : memref<1x1x8xf32, #tpu.memory_space<vmem>>, vector<1x1x8xf32>
    %193 = vector.shape_cast %192 : vector<1x1x8xf32> to vector<1x8xf32>
    %194 = vector.shape_cast %191 : vector<1x8xf32> to vector<1x1x8xf32>
    tpu.vector_store %arg15[%c0_116, %c0_117, %c0_118], %194 {strides = array<i32>} : memref<1x1x8xf32, #tpu.memory_space<vmem>>, vector<1x1x8xf32>,
    return
  }
  func.func @transform_0(%arg0: i32, %arg1: i32) -> (i32, i32, i32) {
    %c0_i32 = arith.constant 0 : i32
    %c0_i32_0 = arith.constant 0 : i32
    return %arg0, %arg1, %c0_i32 : i32, i32, i32
  }
  func.func @transform_1(%arg0: i32, %arg1: i32) -> (i32, i32, i32) {
    %c0_i32 = arith.constant 0 : i32
    %c0_i32_0 = arith.constant 0 : i32
    %c0_i32_1 = arith.constant 0 : i32
    return %arg0, %c0_i32, %c0_i32_0 : i32, i32, i32
  }
  func.func @transform_2(%arg0: i32, %arg1: i32) -> (i32, i32, i32) {
    %c0_i32 = arith.constant 0 : i32
    %c0_i32_0 = arith.constant 0 : i32
    %c0_i32_1 = arith.constant 0 : i32
    return %arg0, %c0_i32, %c0_i32_0 : i32, i32, i32
  }
  func.func @transform_3(%arg0: i32, %arg1: i32) -> (i32, i32) {
    %c0_i32 = arith.constant 0 : i32
    %c0_i32_0 = arith.constant 0 : i32
    %c0_i32_1 = arith.constant 0 : i32
    return %c0_i32, %c0_i32_0 : i32, i32
  }
  func.func @transform_4(%arg0: i32, %arg1: i32) -> (i32, i32) {
    %c0_i32 = arith.constant 0 : i32
    %c0_i32_0 = arith.constant 0 : i32
    %c0_i32_1 = arith.constant 0 : i32
    return %c0_i32, %c0_i32_0 : i32, i32
  }
  func.func @transform_5(%arg0: i32, %arg1: i32) -> (i32, i32) {
    %c0_i32 = arith.constant 0 : i32
    %c0_i32_0 = arith.constant 0 : i32
    %c0_i32_1 = arith.constant 0 : i32
    return %c0_i32, %c0_i32_0 : i32, i32
  }
  func.func @transform_6(%arg0: i32, %arg1: i32) -> (i32, i32, i32) {
    %c0_i32 = arith.constant 0 : i32
    %c0_i32_0 = arith.constant 0 : i32
    %c0_i32_1 = arith.constant 0 : i32
    %c0_i32_2 = arith.constant 0 : i32
    return %c0_i32, %c0_i32_0, %c0_i32_1 : i32, i32, i32
  }
  func.func @transform_7(%arg0: i32, %arg1: i32) -> (i32, i32, i32) {
    %c0_i32 = arith.constant 0 : i32
    %c0_i32_0 = arith.constant 0 : i32
    %c0_i32_1 = arith.constant 0 : i32
    %c0_i32_2 = arith.constant 0 : i32
    return %c0_i32, %c0_i32_0, %c0_i32_1 : i32, i32, i32
  }
  func.func @transform_8(%arg0: i32, %arg1: i32) -> (i32, i32, i32) {
    %c0_i32 = arith.constant 0 : i32
    %c0_i32_0 = arith.constant 0 : i32
    %c0_i32_1 = arith.constant 0 : i32
    %c0_i32_2 = arith.constant 0 : i32
    return %c0_i32, %c0_i32_0, %c0_i32_1 : i32, i32, i32
  }
  func.func @transform_9(%arg0: i32, %arg1: i32) -> (i32, i32, i32) {
    %c0_i32 = arith.constant 0 : i32
    %c0_i32_0 = arith.constant 0 : i32
    %c0_i32_1 = arith.constant 0 : i32
    %c0_i32_2 = arith.constant 0 : i32
    return %c0_i32, %c0_i32_0, %c0_i32_1 : i32, i32, i32
  }
  func.func @transform_10(%arg0: i32, %arg1: i32) -> (i32, i32, i32) {
    %c0_i32 = arith.constant 0 : i32
    %c0_i32_0 = arith.constant 0 : i32
    %c0_i32_1 = arith.constant 0 : i32
    %c0_i32_2 = arith.constant 0 : i32
    return %c0_i32, %c0_i32_0, %c0_i32_1 : i32, i32, i32
  }
  func.func @transform_11(%arg0: i32, %arg1: i32) -> (i32, i32) {
    %c0_i32 = arith.constant 0 : i32
    %c0_i32_0 = arith.constant 0 : i32
    %c0_i32_1 = arith.constant 0 : i32
    return %c0_i32, %c0_i32_0 : i32, i32
  }
  func.func @transform_12(%arg0: i32, %arg1: i32) -> (i32, i32) {
    %c0_i32 = arith.constant 0 : i32
    %c0_i32_0 = arith.constant 0 : i32
    %c0_i32_1 = arith.constant 0 : i32
    return %c0_i32, %c0_i32_0 : i32, i32
  }
  func.func @transform_13(%arg0: i32, %arg1: i32) -> (i32, i32, i32) {
    %c0_i32 = arith.constant 0 : i32
    %c0_i32_0 = arith.constant 0 : i32
    return %arg0, %c0_i32, %arg1 : i32, i32, i32
  }
}

</mosaic_0001>

<llo_original>
// kernel: tpu_custom_call.1
$region0: #{tpu_custom_call.1}
  #allocation0 [shape = 'u32[]', space=smem, size = 0x4, offset = 0x4, fixed_abs, tag = 'smem constant byte address 0x4 - core index']
  #allocation1 [shape = 'u32[72,128]{1,0:T(1,128)}', space=vmem, size = 0x9000, scoped, tag = 'internal scratch']
  #allocation2 [shape = 'f32[1,1]{1,0:T(1,128)S(1)}', space=vmem, size = 0x200, scoped, tag = 'scoped memory for tpu_custom_call.1']
  %s0 = inlined_call_operand.vmem [shape: f32[2,8,3], index: 0, kind: input, shape index: {}]
  %s1 = inlined_call_operand.vmem [shape: f32[2,3,128], index: 1, kind: input, shape index: {}]
  %s2 = inlined_call_operand.vmem [shape: bf16[2,33,128], index: 2, kind: input, shape index: {}]
  %s3 = inlined_call_operand.vmem [shape: bf16[3,64], index: 3, kind: input, shape index: {}]
  %s4 = inlined_call_operand.vmem [shape: f32[1,64], index: 4, kind: input, shape index: {}]
  %s5 = inlined_call_operand.vmem [shape: bf16[32,320], index: 5, kind: input, shape index: {}]
  %s6 = inlined_call_operand.vmem [shape: f32[5,1,64], index: 6, kind: input, shape index: {}]
  %s7 = inlined_call_operand.hbm [shape: bf16[5,64,64], index: 7, kind: input, shape index: {}]
  %s8 = inlined_call_operand.vmem [shape: f32[5,1,64], index: 8, kind: input, shape index: {}]
  %s9 = inlined_call_operand.hbm [shape: bf16[5,64,64], index: 9, kind: input, shape index: {}]
  %s10 = inlined_call_operand.vmem [shape: f32[5,1,64], index: 10, kind: input, shape index: {}]
  %s11 = inlined_call_operand.vmem [shape: bf16[1,64], index: 11, kind: input, shape index: {}]
  %s12 = inlined_call_operand.<no memory space> [shape: f32[1,1], index: 12, kind: input, shape index: {}]
  %s13 = inlined_call_operand.hbm [shape: f32[2,1,8], index: 13, kind: output, shape index: {}]
  %s14 = sld [smem:[#allocation0]]
  $region93: #{tpu_custom_call.1} parent=0
    _
  %s16 = ssub.s32 1, %s14
  %s17 = scalar_select 0, %s16, %s14
  %v18 = vstv %s12
  %19 = vst [vmem:[#allocation2] sm:$0x1] %v18
  $region1: #{tpu_custom_call.1} parent=0
    #allocation3 [shape = 'u8[81920]{0}', space=vmem, size = 0x14000, scoped, tag = 'input window, operand 7, single buffered']
    #allocation4 [shape = 's32[2]{0}', space=sflag, size = 0x8, scoped, tag = 'scoped memory for tpu_custom_call.1']
    #allocation5 [shape = 's32[2]{0}', space=sflag, size = 0x8, scoped, tag = 'scoped memory for tpu_custom_call.1']
    #allocation6 [shape = 'u8[81920]{0}', space=vmem, size = 0x14000, scoped, tag = 'input window, operand 9, single buffered']
    #allocation7 [shape = 's32[1]{0}', space=sflag, size = 0x4, scoped, tag = 'scoped memory for tpu_custom_call.1']
    #allocation8 [shape = 'u8[1024]{0}', space=vmem, size = 0x400, scoped, tag = 'output window, operand 0']
    %20 = vsyncpa [#allocation4], 0
    %21 = vsyncpa [#allocation7], 0
    %22 = vsyncpa [#allocation5], 0
    %s23 = scalar_lea.sflag [#allocation5], 1
    %24 = vsyncpa %s23, 0
    loop: start=0, step=1, limit=4
    $region2: #{tpu_custom_call.1} parent=1 // loop_pre_header
      _
    $region3: #{tpu_custom_call.1} parent=1 // loop_header
      %s26 = sphi 0, %s30
      %p27 = scmp.ge.s32.totalorder %s26, 4
      %s33 = sphi 0, %s45
      %s34 = sphi 0, %s41
      %s35 = sphi 0, %s33
      %s36 = sphi 0, %s34
      %s37 = sphi 0, %s35
      %s38 = sphi 0, %s36
      %s50 = sphi 0, %s52
      %s53 = sphi 0, %s50
      %s54 = sphi 0, %s53
      %s70 = sphi 0, %s54
      %s76 = sphi 0, %s78
      %s79 = sphi 0, %s76
      %s80 = sphi 0, %s79
      %s96 = sphi 0, %s80
      %s102 = sphi 0, %s104
      %s105 = sphi 0, %s102
      %s106 = sphi 0, %s105
      %s122 = sphi 0, %s106
      %s126 = sphi 0, %s126
      %s128 = sphi 0, %s126
      %s129 = sphi 0, %s128
      %s143 = sphi 0, %s129
      %s147 = sphi 0, %s147
      %s149 = sphi 0, %s147
      %s150 = sphi 0, %s149
      %s164 = sphi 0, %s150
      %s168 = sphi 0, %s168
      %s170 = sphi 0, %s168
      %s171 = sphi 0, %s170
      %s185 = sphi 0, %s171
      %s189 = sphi 0, %s189
      %s191 = sphi 0, %s189
      %s192 = sphi 0, %s191
      %s206 = sphi 0, %s192
      %s210 = sphi 0, %s210
      %s212 = sphi 0, %s210
      %s213 = sphi 0, %s212
      %s227 = sphi 0, %s213
      %s231 = sphi 0, %s231
      %s233 = sphi 0, %s231
      %s234 = sphi 0, %s233
      %s248 = sphi 0, %s234
      %s252 = sphi 0, %s252
      %s254 = sphi 0, %s252
      %s255 = sphi 0, %s254
      %s269 = sphi 0, %s255
      %s273 = sphi 0, %s273
      %s275 = sphi 0, %s273
      %s276 = sphi 0, %s275
      %s290 = sphi 0, %s276
      %s294 = sphi 0, %s294
      %s296 = sphi 0, %s294
      %s297 = sphi 0, %s296
      %s311 = sphi 0, %s297
      %s315 = sphi 0, %s315
      %s317 = sphi 0, %s315
      %s318 = sphi 0, %s317
      %s332 = sphi 0, %s318
      %s340 = sphi 0, %s342
      %s343 = sphi 0, %s340
      %s344 = sphi 0, %s343
      %s360 = sphi 0, %s344
    $region4: #{tpu_custom_call.1} parent=1 // loop_header_branch
      %29 = sbr.rel (%p27) target = $region8
    $region5: #{tpu_custom_call.1} parent=1 // loop_body
      %s31 = ssub.s32 %s26, 1
      %s32 = ssub.s32 %s26, 2
      %s39 = sadd.s32 1, %s34
      %p40 = scmp.ge.s32.totalorder %s39, 1
      %s41 = scalar_select %p40, 0, %s39
      %s42 = sadd.s32 1, %s33
      %s43 = scalar_select %p40, %s42, %s33
      %p44 = scmp.ge.s32.totalorder %s43, 2
      %s45 = scalar_select %p44, 0, %s43
      %s46 = ssub.s32 %s33, %s45
      %s47 = ssub.s32 %s34, %s41
      %s48 = sor.u32 %s46, %s47
      %p49 = scmp.eq.s32.totalorder %s48, 0
      %s51 = sadd.s32 %s50, 1
      %s52 = scalar_select %p49, %s50, %s51
      %p55 = pneg %p49
      %p56 = scmp.eq.s32.totalorder %s26, 1
      %p57 = por %p55, %p56
      %p58 = scmp.ne.s32.totalorder %s50, %s53
      %p59 = scmp.eq.s32.totalorder %s26, 0
      %p60 = por %p58, %p59
      %p61 = scmp.ne.s32.totalorder %s50, %s53
      %p62 = scmp.eq.s32.totalorder %s31, 1
      %p63 = por %p61, %p62
      %p64 = scmp.ne.s32.totalorder %s53, %s54
      %p65 = scmp.eq.s32.totalorder %s31, 0
      %p66 = por %p64, %p65
      %p67 = scmp.ne.s32.totalorder %s53, %s54
      %p68 = scmp.eq.s32.totalorder %s32, 1
      %p69 = por %p67, %p68
      %p71 = scmp.ne.s32.totalorder %s54, %s70
      %p72 = scmp.eq.s32.totalorder %s32, 0
      %p73 = por %p71, %p72
      %s74 = ssub.s32 %s33, %s45
      %p75 = scmp.eq.s32.totalorder %s74, 0
      %s77 = sadd.s32 %s76, 1
      %s78 = scalar_select %p75, %s76, %s77
      %p81 = pneg %p75
      %p82 = scmp.eq.s32.totalorder %s26, 1
      %p83 = por %p81, %p82
      %p84 = scmp.ne.s32.totalorder %s76, %s79
      %p85 = scmp.eq.s32.totalorder %s26, 0
      %p86 = por %p84, %p85
      %p87 = scmp.ne.s32.totalorder %s76, %s79
      %p88 = scmp.eq.s32.totalorder %s31, 1
      %p89 = por %p87, %p88
      %p90 = scmp.ne.s32.totalorder %s79, %s80
      %p91 = scmp.eq.s32.totalorder %s31, 0
      %p92 = por %p90, %p91
      %p93 = scmp.ne.s32.totalorder %s79, %s80
      %p94 = scmp.eq.s32.totalorder %s32, 1
      %p95 = por %p93, %p94
      %p97 = scmp.ne.s32.totalorder %s80, %s96
      %p98 = scmp.eq.s32.totalorder %s32, 0
      %p99 = por %p97, %p98
      %s100 = ssub.s32 %s33, %s45
      %p101 = scmp.eq.s32.totalorder %s100, 0
      %s103 = sadd.s32 %s102, 1
      %s104 = scalar_select %p101, %s102, %s103
      %p107 = pneg %p101
      %p108 = scmp.eq.s32.totalorder %s26, 1
      %p109 = por %p107, %p108
      %p110 = scmp.ne.s32.totalorder %s102, %s105
      %p111 = scmp.eq.s32.totalorder %s26, 0
      %p112 = por %p110, %p111
      %p113 = scmp.ne.s32.totalorder %s102, %s105
      %p114 = scmp.eq.s32.totalorder %s31, 1
      %p115 = por %p113, %p114
      %p116 = scmp.ne.s32.totalorder %s105, %s106
      %p117 = scmp.eq.s32.totalorder %s31, 0
      %p118 = por %p116, %p117
      %p119 = scmp.ne.s32.totalorder %s105, %s106
      %p120 = scmp.eq.s32.totalorder %s32, 1
      %p121 = por %p119, %p120
      %p123 = scmp.ne.s32.totalorder %s106, %s122
      %p124 = scmp.eq.s32.totalorder %s32, 0
      %p125 = por %p123, %p124
      %s127 = sadd.s32 %s126, 1
      %p130 = scmp.eq.s32.totalorder %s26, 1
      %p131 = scmp.ne.s32.totalorder %s126, %s128
      %p132 = scmp.eq.s32.totalorder %s26, 0
      %p133 = por %p131, %p132
      %p134 = scmp.ne.s32.totalorder %s126, %s128
      %p135 = scmp.eq.s32.totalorder %s31, 1
      %p136 = por %p134, %p135
      %p137 = scmp.ne.s32.totalorder %s128, %s129
      %p138 = scmp.eq.s32.totalorder %s31, 0
      %p139 = por %p137, %p138
      %p140 = scmp.ne.s32.totalorder %s128, %s129
      %p141 = scmp.eq.s32.totalorder %s32, 1
      %p142 = por %p140, %p141
      %p144 = scmp.ne.s32.totalorder %s129, %s143
      %p145 = scmp.eq.s32.totalorder %s32, 0
      %p146 = por %p144, %p145
      %s148 = sadd.s32 %s147, 1
      %p151 = scmp.eq.s32.totalorder %s26, 1
      %p152 = scmp.ne.s32.totalorder %s147, %s149
      %p153 = scmp.eq.s32.totalorder %s26, 0
      %p154 = por %p152, %p153
      %p155 = scmp.ne.s32.totalorder %s147, %s149
      %p156 = scmp.eq.s32.totalorder %s31, 1
      %p157 = por %p155, %p156
      %p158 = scmp.ne.s32.totalorder %s149, %s150
      %p159 = scmp.eq.s32.totalorder %s31, 0
      %p160 = por %p158, %p159
      %p161 = scmp.ne.s32.totalorder %s149, %s150
      %p162 = scmp.eq.s32.totalorder %s32, 1
      %p163 = por %p161, %p162
      %p165 = scmp.ne.s32.totalorder %s150, %s164
      %p166 = scmp.eq.s32.totalorder %s32, 0
      %p167 = por %p165, %p166
      %s169 = sadd.s32 %s168, 1
      %p172 = scmp.eq.s32.totalorder %s26, 1
      %p173 = scmp.ne.s32.totalorder %s168, %s170
      %p174 = scmp.eq.s32.totalorder %s26, 0
      %p175 = por %p173, %p174
      %p176 = scmp.ne.s32.totalorder %s168, %s170
      %p177 = scmp.eq.s32.totalorder %s31, 1
      %p178 = por %p176, %p177
      %p179 = scmp.ne.s32.totalorder %s170, %s171
      %p180 = scmp.eq.s32.totalorder %s31, 0
      %p181 = por %p179, %p180
      %p182 = scmp.ne.s32.totalorder %s170, %s171
      %p183 = scmp.eq.s32.totalorder %s32, 1
      %p184 = por %p182, %p183
      %p186 = scmp.ne.s32.totalorder %s171, %s185
      %p187 = scmp.eq.s32.totalorder %s32, 0
      %p188 = por %p186, %p187
      %s190 = sadd.s32 %s189, 1
      %p193 = scmp.eq.s32.totalorder %s26, 1
      %p194 = scmp.ne.s32.totalorder %s189, %s191
      %p195 = scmp.eq.s32.totalorder %s26, 0
      %p196 = por %p194, %p195
      %p197 = scmp.ne.s32.totalorder %s189, %s191
      %p198 = scmp.eq.s32.totalorder %s31, 1
      %p199 = por %p197, %p198
      %p200 = scmp.ne.s32.totalorder %s191, %s192
      %p201 = scmp.eq.s32.totalorder %s31, 0
      %p202 = por %p200, %p201
      %p203 = scmp.ne.s32.totalorder %s191, %s192
      %p204 = scmp.eq.s32.totalorder %s32, 1
      %p205 = por %p203, %p204
      %p207 = scmp.ne.s32.totalorder %s192, %s206
      %p208 = scmp.eq.s32.totalorder %s32, 0
      %p209 = por %p207, %p208
      %s211 = sadd.s32 %s210, 1
      %p214 = scmp.eq.s32.totalorder %s26, 1
      %p215 = scmp.ne.s32.totalorder %s210, %s212
      %p216 = scmp.eq.s32.totalorder %s26, 0
      %p217 = por %p215, %p216
      %p218 = scmp.ne.s32.totalorder %s210, %s212
      %p219 = scmp.eq.s32.totalorder %s31, 1
      %p220 = por %p218, %p219
      %p221 = scmp.ne.s32.totalorder %s212, %s213
      %p222 = scmp.eq.s32.totalorder %s31, 0
      %p223 = por %p221, %p222
      %p224 = scmp.ne.s32.totalorder %s212, %s213
      %p225 = scmp.eq.s32.totalorder %s32, 1
      %p226 = por %p224, %p225
      %p228 = scmp.ne.s32.totalorder %s213, %s227
      %p229 = scmp.eq.s32.totalorder %s32, 0
      %p230 = por %p228, %p229
      %s232 = sadd.s32 %s231, 1
      %p235 = scmp.eq.s32.totalorder %s26, 1
      %p236 = scmp.ne.s32.totalorder %s231, %s233
      %p237 = scmp.eq.s32.totalorder %s26, 0
      %p238 = por %p236, %p237
      %p239 = scmp.ne.s32.totalorder %s231, %s233
      %p240 = scmp.eq.s32.totalorder %s31, 1
      %p241 = por %p239, %p240
      %p242 = scmp.ne.s32.totalorder %s233, %s234
      %p243 = scmp.eq.s32.totalorder %s31, 0
      %p244 = por %p242, %p243
      %p245 = scmp.ne.s32.totalorder %s233, %s234
      %p246 = scmp.eq.s32.totalorder %s32, 1
      %p247 = por %p245, %p246
      %p249 = scmp.ne.s32.totalorder %s234, %s248
      %p250 = scmp.eq.s32.totalorder %s32, 0
      %p251 = por %p249, %p250
      %s253 = sadd.s32 %s252, 1
      %p256 = scmp.eq.s32.totalorder %s26, 1
      %p257 = scmp.ne.s32.totalorder %s252, %s254
      %p258 = scmp.eq.s32.totalorder %s26, 0
      %p259 = por %p257, %p258
      %p260 = scmp.ne.s32.totalorder %s252, %s254
      %p261 = scmp.eq.s32.totalorder %s31, 1
      %p262 = por %p260, %p261
      %p263 = scmp.ne.s32.totalorder %s254, %s255
      %p264 = scmp.eq.s32.totalorder %s31, 0
      %p265 = por %p263, %p264
      %p266 = scmp.ne.s32.totalorder %s254, %s255
      %p267 = scmp.eq.s32.totalorder %s32, 1
      %p268 = por %p266, %p267
      %p270 = scmp.ne.s32.totalorder %s255, %s269
      %p271 = scmp.eq.s32.totalorder %s32, 0
      %p272 = por %p270, %p271
      %s274 = sadd.s32 %s273, 1
      %p277 = scmp.eq.s32.totalorder %s26, 1
      %p278 = scmp.ne.s32.totalorder %s273, %s275
      %p279 = scmp.eq.s32.totalorder %s26, 0
      %p280 = por %p278, %p279
      %p281 = scmp.ne.s32.totalorder %s273, %s275
      %p282 = scmp.eq.s32.totalorder %s31, 1
      %p283 = por %p281, %p282
      %p284 = scmp.ne.s32.totalorder %s275, %s276
      %p285 = scmp.eq.s32.totalorder %s31, 0
      %p286 = por %p284, %p285
      %p287 = scmp.ne.s32.totalorder %s275, %s276
      %p288 = scmp.eq.s32.totalorder %s32, 1
      %p289 = por %p287, %p288
      %p291 = scmp.ne.s32.totalorder %s276, %s290
      %p292 = scmp.eq.s32.totalorder %s32, 0
      %p293 = por %p291, %p292
      %s295 = sadd.s32 %s294, 1
      %p298 = scmp.eq.s32.totalorder %s26, 1
      %p299 = scmp.ne.s32.totalorder %s294, %s296
      %p300 = scmp.eq.s32.totalorder %s26, 0
      %p301 = por %p299, %p300
      %p302 = scmp.ne.s32.totalorder %s294, %s296
      %p303 = scmp.eq.s32.totalorder %s31, 1
      %p304 = por %p302, %p303
      %p305 = scmp.ne.s32.totalorder %s296, %s297
      %p306 = scmp.eq.s32.totalorder %s31, 0
      %p307 = por %p305, %p306
      %p308 = scmp.ne.s32.totalorder %s296, %s297
      %p309 = scmp.eq.s32.totalorder %s32, 1
      %p310 = por %p308, %p309
      %p312 = scmp.ne.s32.totalorder %s297, %s311
      %p313 = scmp.eq.s32.totalorder %s32, 0
      %p314 = por %p312, %p313
      %s316 = sadd.s32 %s315, 1
      %p319 = scmp.eq.s32.totalorder %s26, 1
      %p320 = scmp.ne.s32.totalorder %s315, %s317
      %p321 = scmp.eq.s32.totalorder %s26, 0
      %p322 = por %p320, %p321
      %p323 = scmp.ne.s32.totalorder %s315, %s317
      %p324 = scmp.eq.s32.totalorder %s31, 1
      %p325 = por %p323, %p324
      %p326 = scmp.ne.s32.totalorder %s317, %s318
      %p327 = scmp.eq.s32.totalorder %s31, 0
      %p328 = por %p326, %p327
      %p329 = scmp.ne.s32.totalorder %s317, %s318
      %p330 = scmp.eq.s32.totalorder %s32, 1
      %p331 = por %p329, %p330
      %p333 = scmp.ne.s32.totalorder %s318, %s332
      %p334 = scmp.eq.s32.totalorder %s32, 0
      %p335 = por %p333, %p334
      %s336 = ssub.s32 %s33, %s45
      %s337 = ssub.s32 %s34, %s41
      %s338 = sor.u32 %s336, %s337
      %p339 = scmp.eq.s32.totalorder %s338, 0
      %s341 = sadd.s32 %s340, 1
      %s342 = scalar_select %p339, %s340, %s341
      %p345 = pneg %p339
      %p346 = scmp.eq.s32.totalorder %s26, 1
      %p347 = por %p345, %p346
      %p348 = scmp.ne.s32.totalorder %s340, %s343
      %p349 = scmp.eq.s32.totalorder %s26, 0
      %p350 = por %p348, %p349
      %p351 = scmp.ne.s32.totalorder %s340, %s343
      %p352 = scmp.eq.s32.totalorder %s31, 1
      %p353 = por %p351, %p352
      %p354 = scmp.ne.s32.totalorder %s343, %s344
      %p355 = scmp.eq.s32.totalorder %s31, 0
      %p356 = por %p354, %p355
      %p357 = scmp.ne.s32.totalorder %s343, %s344
      %p358 = scmp.eq.s32.totalorder %s32, 1
      %p359 = por %p357, %p358
      %p361 = scmp.ne.s32.totalorder %s344, %s360
      %p362 = scmp.eq.s32.totalorder %s32, 0
      %p363 = por %p361, %p362
      %p364 = scmp.le.s32.totalorder 1, %s26
      %p365 = scmp.lt.s32.totalorder %s26, 3
      %p366 = pnand %p364, %p365
      %p367 = pneg %p366
      // Predicated region
      $region9: #{tpu_custom_call.1} parent=5 // pred_check
        _
      $region10: #{tpu_custom_call.1} parent=5 // pred_check_branch
        %369 = sbr.rel (%p366) target = $region12
      $region11: #{tpu_custom_call.1} parent=5 // pred_region
        %s370 = ssub.s32 %s26, 1
        // Predicated region
        $region13: #{tpu_custom_call.1} parent=11 // pred_check
          %p371 = pneg %p139
        $region14: #{tpu_custom_call.1} parent=11 // pred_check_branch
          %373 = sbr.rel (%p371) target = $region16
        $region15: #{tpu_custom_call.1} parent=11 // pred_region
          _
        $region16: #{tpu_custom_call.1} parent=11 // pred_fallthru
          _
        // Predicated region
        $region17: #{tpu_custom_call.1} parent=11 // pred_check
          %p374 = pneg %p160
        $region18: #{tpu_custom_call.1} parent=11 // pred_check_branch
          %376 = sbr.rel (%p374) target = $region20
        $region19: #{tpu_custom_call.1} parent=11 // pred_region
          _
        $region20: #{tpu_custom_call.1} parent=11 // pred_fallthru
          _
        // Predicated region
        $region21: #{tpu_custom_call.1} parent=11 // pred_check
          %p377 = pneg %p181
        $region22: #{tpu_custom_call.1} parent=11 // pred_check_branch
          %379 = sbr.rel (%p377) target = $region24
        $region23: #{tpu_custom_call.1} parent=11 // pred_region
          _
        $region24: #{tpu_custom_call.1} parent=11 // pred_fallthru
          _
        // Predicated region
        $region25: #{tpu_custom_call.1} parent=11 // pred_check
          %p380 = pneg %p202
        $region26: #{tpu_custom_call.1} parent=11 // pred_check_branch
          %382 = sbr.rel (%p380) target = $region28
        $region27: #{tpu_custom_call.1} parent=11 // pred_region
          _
        $region28: #{tpu_custom_call.1} parent=11 // pred_fallthru
          _
        // Predicated region
        $region29: #{tpu_custom_call.1} parent=11 // pred_check
          %p383 = pneg %p223
        $region30: #{tpu_custom_call.1} parent=11 // pred_check_branch
          %385 = sbr.rel (%p383) target = $region32
        $region31: #{tpu_custom_call.1} parent=11 // pred_region
          %387 = vsyncadd [#allocation4], 0
          %s388 = sshll.u32 %s7, 4
          %s389 = int_to_ptr.hbm [resolvable:$true] %s388
          %s390 = sshll.u32 [#allocation3], 4
          %s391 = int_to_ptr.vmem [resolvable:$true] %s390
          %396 = dma.hbm_to_vmem [thread:$0]  %s389, 2560, %s391, [#allocation4], 64, 64, 4
        $region32: #{tpu_custom_call.1} parent=11 // pred_fallthru
          _
        // Predicated region
        $region33: #{tpu_custom_call.1} parent=11 // pred_check
          %p397 = pneg %p244
        $region34: #{tpu_custom_call.1} parent=11 // pred_check_branch
          %399 = sbr.rel (%p397) target = $region36
        $region35: #{tpu_custom_call.1} parent=11 // pred_region
          _
        $region36: #{tpu_custom_call.1} parent=11 // pred_fallthru
          _
        // Predicated region
        $region37: #{tpu_custom_call.1} parent=11 // pred_check
          %p400 = pneg %p265
        $region38: #{tpu_custom_call.1} parent=11 // pred_check_branch
          %402 = sbr.rel (%p400) target = $region40
        $region39: #{tpu_custom_call.1} parent=11 // pred_region
          %404 = vsyncadd [#allocation7], 0
          %s405 = sshll.u32 %s9, 4
          %s406 = int_to_ptr.hbm [resolvable:$true] %s405
          %s407 = sshll.u32 [#allocation6], 4
          %s408 = int_to_ptr.vmem [resolvable:$true] %s407
          %413 = dma.hbm_to_vmem [thread:$0]  %s406, 2560, %s408, [#allocation7], 64, 64, 4
        $region40: #{tpu_custom_call.1} parent=11 // pred_fallthru
          _
        // Predicated region
        $region41: #{tpu_custom_call.1} parent=11 // pred_check
          %p414 = pneg %p286
        $region42: #{tpu_custom_call.1} parent=11 // pred_check_branch
          %416 = sbr.rel (%p414) target = $region44
        $region43: #{tpu_custom_call.1} parent=11 // pred_region
          _
        $region44: #{tpu_custom_call.1} parent=11 // pred_fallthru
          _
        // Predicated region
        $region45: #{tpu_custom_call.1} parent=11 // pred_check
          %p417 = pneg %p307
        $region46: #{tpu_custom_call.1} parent=11 // pred_check_branch
          %419 = sbr.rel (%p417) target = $region48
        $region47: #{tpu_custom_call.1} parent=11 // pred_region
          _
        $region48: #{tpu_custom_call.1} parent=11 // pred_fallthru
          _
        // Predicated region
        $region49: #{tpu_custom_call.1} parent=11 // pred_check
          %p420 = pneg %p328
        $region50: #{tpu_custom_call.1} parent=11 // pred_check_branch
          %422 = sbr.rel (%p420) target = $region52
        $region51: #{tpu_custom_call.1} parent=11 // pred_region
          _
        $region52: #{tpu_custom_call.1} parent=11 // pred_fallthru
          _
      $region12: #{tpu_custom_call.1} parent=5 // pred_fallthru
        _
      %p423 = scmp.lt.s32.totalorder %s26, 2
      // Predicated region
      $region53: #{tpu_custom_call.1} parent=5 // pred_check
        %p424 = pneg %p423
      $region54: #{tpu_custom_call.1} parent=5 // pred_check_branch
        %426 = sbr.rel (%p424) target = $region56
      $region55: #{tpu_custom_call.1} parent=5 // pred_region
        // Predicated region
        $region57: #{tpu_custom_call.1} parent=55 // pred_check
          %p427 = pneg %p60
        $region58: #{tpu_custom_call.1} parent=55 // pred_check_branch
          %429 = sbr.rel (%p427) target = $region60
        $region59: #{tpu_custom_call.1} parent=55 // pred_region
          %p430 = scmp.lt.s32.totalorder %s33, 1
          %s431 = scalar_select %p430, %s33, 1
          %p432 = scmp.lt.s32.totalorder %s34, 0
          %s433 = scalar_select %p432, %s34, 0
          %s434 = sadd.s32 %s433, %s431
          %s435 = smul.addr %s434, 8
          %s436 = scalar_lea.vmem %s0, %s435
        $region60: #{tpu_custom_call.1} parent=55 // pred_fallthru
          _
        // Predicated region
        $region61: #{tpu_custom_call.1} parent=55 // pred_check
          %p437 = pneg %p86
        $region62: #{tpu_custom_call.1} parent=55 // pred_check_branch
          %439 = sbr.rel (%p437) target = $region64
        $region63: #{tpu_custom_call.1} parent=55 // pred_region
          %p440 = scmp.lt.s32.totalorder %s33, 1
          %s441 = scalar_select %p440, %s33, 1
          %s442 = smul.addr %s441, 4
          %s443 = scalar_lea.vmem %s1, %s442
        $region64: #{tpu_custom_call.1} parent=55 // pred_fallthru
          _
        // Predicated region
        $region65: #{tpu_custom_call.1} parent=55 // pred_check
          %p444 = pneg %p112
        $region66: #{tpu_custom_call.1} parent=55 // pred_check_branch
          %446 = sbr.rel (%p444) target = $region68
        $region67: #{tpu_custom_call.1} parent=55 // pred_region
          %p447 = scmp.lt.s32.totalorder %s33, 1
          %s448 = scalar_select %p447, %s33, 1
          %s449 = smul.addr %s448, 5
          %s450 = smul.addr %s449, 4
          %s451 = scalar_lea.vmem %s2, %s450
        $region68: #{tpu_custom_call.1} parent=55 // pred_fallthru
          _
      $region56: #{tpu_custom_call.1} parent=5 // pred_fallthru
        _
      %p452 = scmp.le.s32.totalorder 1, %s26
      %p453 = scmp.lt.s32.totalorder %s26, 3
      %p454 = pnand %p452, %p453
      %p455 = pneg %p454
      // Predicated region
      $region69: #{tpu_custom_call.1} parent=5 // pred_check
        _
      $region70: #{tpu_custom_call.1} parent=5 // pred_check_branch
        %457 = sbr.rel (%p454) target = $region72
      $region71: #{tpu_custom_call.1} parent=5 // pred_region
        %s458 = ssub.s32 %s26, 1
        // Predicated region
        $region73: #{tpu_custom_call.1} parent=71 // pred_check
          %p459 = pneg %p223
        $region74: #{tpu_custom_call.1} parent=71 // pred_check_branch
          %461 = sbr.rel (%p459) target = $region76
        $region75: #{tpu_custom_call.1} parent=71 // pred_region
          %463 = dma.done [#allocation4], 2560
        $region76: #{tpu_custom_call.1} parent=71 // pred_fallthru
          _
        // Predicated region
        $region77: #{tpu_custom_call.1} parent=71 // pred_check
          %p464 = pneg %p265
        $region78: #{tpu_custom_call.1} parent=71 // pred_check_branch
          %466 = sbr.rel (%p464) target = $region80
        $region79: #{tpu_custom_call.1} parent=71 // pred_region
          %468 = dma.done [#allocation7], 2560
        $region80: #{tpu_custom_call.1} parent=71 // pred_fallthru
          _
        %p469 = scmp.lt.s32.totalorder %s35, 1
        %s470 = scalar_select %p469, %s35, 1
        %p471 = scmp.lt.s32.totalorder %s36, 0
        %s472 = scalar_select %p471, %s36, 0
        %s473 = sadd.s32 %s472, %s470
        %s474 = smul.addr %s473, 8
        %s475 = scalar_lea.vmem %s0, %s474
        %p476 = pneg %p66
        %p477 = pneg %p63
        %p478 = scmp.lt.s32.totalorder %s35, 1
        %s479 = scalar_select %p478, %s35, 1
        %s480 = smul.addr %s479, 4
        %s481 = scalar_lea.vmem %s1, %s480
        %p482 = pneg %p92
        %p483 = pneg %p89
        %p484 = scmp.lt.s32.totalorder %s35, 1
        %s485 = scalar_select %p484, %s35, 1
        %s486 = smul.addr %s485, 5
        %s487 = smul.addr %s486, 4
        %s488 = scalar_lea.vmem %s2, %s487
        %p489 = pneg %p118
        %p490 = pneg %p115
        %p491 = pneg %p139
        %p492 = pneg %p136
        %p493 = pneg %p160
        %p494 = pneg %p157
        %p495 = pneg %p181
        %p496 = pneg %p178
        %p497 = pneg %p202
        %p498 = pneg %p199
        %p499 = pneg %p223
        %p500 = pneg %p220
        %p501 = pneg %p244
        %p502 = pneg %p241
        %p503 = pneg %p265
        %p504 = pneg %p262
        %p505 = pneg %p286
        %p506 = pneg %p283
        %p507 = pneg %p307
        %p508 = pneg %p304
        %p509 = pneg %p328
        %p510 = pneg %p325
        %p511 = pneg %p356
        %p512 = pneg %p353
        %s513 = sand.u32 %s343, 1
        %s514 = scalar_lea.sflag [#allocation5], %s513
        %s515 = sand.u32 %s343, 1
        %s516 = scalar_lea.vmem [#allocation8], %s515
        %p517 = scmp.lt.s32.totalorder %s35, 1
        %s518 = scalar_select %p517, %s35, 1
        %p519 = scmp.lt.s32.totalorder %s36, 0
        %s520 = scalar_select %p519, %s36, 0
        %s521 = sadd.s32 %s520, %s518
        %s522 = smul.addr %s521, 8
        %s523 = scalar_lea.vmem %s0, %s522
        %p524 = scmp.lt.s32.totalorder %s35, 1
        %s525 = scalar_select %p524, %s35, 1
        %s526 = smul.addr %s525, 4
        %s527 = scalar_lea.vmem %s1, %s526
        %p528 = scmp.lt.s32.totalorder %s35, 1
        %s529 = scalar_select %p528, %s35, 1
        %s530 = smul.addr %s529, 5
        %s531 = smul.addr %s530, 4
        %s532 = scalar_lea.vmem %s2, %s531
        %v534 = vld [vmem:[%s523] sm:$0xff]
        %v535 = vld [vmem:[%s527] sm:$0x7]
        %v536 = vld [vmem:[%s532] sm:$0xf]
        %v537 = vld [vmem:[%s532 + $0x4] sm:$0xf]
        %v538 = vld [vmem:[%s532 + $0x8] sm:$0xf]
        %v539 = vld [vmem:[%s532 + $0xc] sm:$0xf]
        %v540 = vld [vmem:[%s532 + $0x10] sm:$0x1]
        %542 = vset.pattern.permute.xlu0 0
        %543 = vperm.xlu0 %542, %v534
        %v544 = vpop.permute.xlu0 %543
        %v546 = vperm.slane %v535, 0
        %v547 = vsub.f32 %v544, %v546
        %v548 = vmul.f32 %v547, %v547
        %549 = vset.pattern.permute.xlu0 1
        %550 = vperm.xlu0 %549, %v534
        %v551 = vpop.permute.xlu0 %550
        %v553 = vperm.slane %v535, 1
        %v554 = vsub.f32 %v551, %v553
        %v555 = vmul.f32 %v554, %v554
        %v556 = vadd.f32 %v548, %v555
        %557 = vset.pattern.permute.xlu0 2
        %558 = vperm.xlu0 %557, %v534
        %v559 = vpop.permute.xlu0 %558
        %v561 = vperm.slane %v535, 2
        %v562 = vsub.f32 %v559, %v561
        %v563 = vmul.f32 %v562, %v562
        %v564 = vadd.f32 %v556, %v563
        %v565 = vmul.f32 %v564, -25.0
        %v566 = vmul.f32 %v565, 1.442695
        %v567 = vpow.pop %v566
        %v568 = vpack.c.bf16 %v567, %v567
        %v574 = vunpack.c.l.b16 %v536
        %v575 = vunpack.c.l.b16 %v537
        %v576 = vunpack.c.l.b16 %v538
        %v577 = vunpack.c.l.b16 %v539
        %v578 = vunpack.c.l.b16 %v540
        %v579 = vpack.c.b16 %v575, %v574
        %v580 = vpack.c.b16 %v577, %v576
        %v581 = vpack.c.b16 %v578, %v578
        %585 = vmatpush.bf16.xpose.msra.mxu0 0
        %586 = vmatpush.bf16.xpose.msra.mxu0 0
        %587 = vmatpush.bf16.xpose.msra.mxu0 0
        %588 = vmatpush.bf16.xpose.msra.mxu0 0
        %589 = vmatpush.bf16.xpose.msra.mxu0 0
        %590 = vmatpush.bf16.xpose.msra.mxu0 %v581
        %591 = vmatpush.bf16.xpose.msra.mxu0 %v580
        %592 = vmatpush.bf16.xpose.msra.mxu0 %v579
        %593 = vmatmul.bf16.gmra.mxu0 %v568
        %v594 = vpop.f32.mrf.mxu0
        %v595 = vadd.f32 0.0, %v594
        %v596 = vpop.f32.mrf.mxu0
        %597 = vdwg.mxu0
        %v598 = vmax.f32 %v595, 1e-30
        %v599 = vrcp.pop %v598
        %601 = vset.pattern.permute.xlu0 32
        %602 = vperm.xlu0 %601, %v599
        %v603 = vpop.permute.xlu0 %602
        %v605 = vmul.f32 %v595, %v603
        %v606 = vpack.c.bf16 %v534, %v534
        %v607 = vld [vmem:[%s3] sm:$0x3]
        %v608 = vld [vmem:[%s4] sm:$0x1]
        %v610 = vperm.slane %v608, 0
        %vm612 = vcmask 23552
        %v614 = vsel %vm612, %v606, 0
        %vm616 = vcmask 1040384
        %vm617 = vcmask 1041408
        %v618 = vsel %vm616, 4294967295, 65535
        %v619 = vsel %vm617, %v618, 0
        %v621 = vand.u32 %v607, %v619
        %623 = vmatpush.bf16.msra.mxu0 0
        %624 = vmatpush.bf16.msra.mxu0 0
        %625 = vmatpush.bf16.msra.mxu0 0
        %626 = vmatpush.bf16.msra.mxu0 0
        %627 = vmatpush.bf16.msra.mxu0 0
        %628 = vmatpush.bf16.msra.mxu0 0
        %629 = vmatpush.bf16.msra.mxu0 0
        %630 = vmatpush.bf16.msra.mxu0 %v621
        %631 = vmatmul.bf16.gmra.mxu0 %v614
        %v632 = vpop.f32.mrf.mxu0
        %v633 = vadd.f32 %v610, %v632
        %v634 = vpop.f32.mrf.mxu0
        %635 = vdwg.mxu0
        %v636 = vpack.c.bf16 %v605, %v605
        %v637 = vld [vmem:[%s5] sm:$0xff]
        %v638 = vld [vmem:[%s5 + $0x8] sm:$0xf]
        %v639 = vld [vmem:[%s5 + $0xc] sm:$0xff]
        %v640 = vld [vmem:[%s5 + $0x14] sm:$0xf]
        %v641 = vld [vmem:[%s5 + $0x18] sm:$0xff]
        %v642 = vld [vmem:[%s5 + $0x20] sm:$0xf]
        %v643 = vld [vmem:[%s5 + $0x24] sm:$0xff]
        %v644 = vld [vmem:[%s5 + $0x2c] sm:$0xf]
        %v653 = vunpack.c.l.b16 %v637
        %v654 = vunpack.c.h.b16 %v637
        %v655 = vunpack.c.l.b16 %v638
        %v656 = vunpack.c.l.b16 %v639
        %v657 = vunpack.c.h.b16 %v639
        %v658 = vunpack.c.l.b16 %v640
        %v659 = vunpack.c.l.b16 %v641
        %v660 = vunpack.c.h.b16 %v641
        %v661 = vunpack.c.l.b16 %v642
        %v662 = vunpack.c.l.b16 %v643
        %v663 = vunpack.c.h.b16 %v643
        %v664 = vunpack.c.l.b16 %v644
        %v665 = vpack.c.b16 %v656, %v653
        %v666 = vpack.c.b16 %v657, %v654
        %v667 = vpack.c.b16 %v658, %v655
        %v668 = vpack.c.b16 %v662, %v659
        %v669 = vpack.c.b16 %v663, %v660
        %v670 = vpack.c.b16 %v664, %v661
        %vm677 = vcmask 261120
        %v679 = vsel %vm677, %v636, 0
        %681 = vmatpush.bf16.msra.mxu0 0
        %682 = vmatpush.bf16.msra.mxu0 0
        %683 = vmatpush.bf16.msra.mxu0 0
        %684 = vmatpush.bf16.msra.mxu0 0
        %685 = vmatpush.bf16.msra.mxu0 0
        %686 = vmatpush.bf16.msra.mxu0 0
        %687 = vmatpush.bf16.msra.mxu0 %v668
        %688 = vmatpush.bf16.msra.mxu0 %v665
        %689 = vmatmul.bf16.gmra.mxu0 %v679
        %v690 = vpop.f32.mrf.mxu0
        %v691 = vadd.f32 0.0, %v690
        %v692 = vpop.f32.mrf.mxu0
        %693 = vdwg.mxu0
        %694 = vmatpush.bf16.msra.mxu0 0
        %695 = vmatpush.bf16.msra.mxu0 0
        %696 = vmatpush.bf16.msra.mxu0 0
        %697 = vmatpush.bf16.msra.mxu0 0
        %698 = vmatpush.bf16.msra.mxu0 0
        %699 = vmatpush.bf16.msra.mxu0 0
        %700 = vmatpush.bf16.msra.mxu0 %v669
        %701 = vmatpush.bf16.msra.mxu0 %v666
        %702 = vmatmul.bf16.gmra.mxu0 %v679
        %v703 = vpop.f32.mrf.mxu0
        %v704 = vadd.f32 0.0, %v703
        %v705 = vpop.f32.mrf.mxu0
        %706 = vdwg.mxu0
        %707 = vmatpush.bf16.msra.mxu0 0
        %708 = vmatpush.bf16.msra.mxu0 0
        %709 = vmatpush.bf16.msra.mxu0 0
        %710 = vmatpush.bf16.msra.mxu0 0
        %711 = vmatpush.bf16.msra.mxu0 0
        %712 = vmatpush.bf16.msra.mxu0 0
        %713 = vmatpush.bf16.msra.mxu0 %v670
        %714 = vmatpush.bf16.msra.mxu0 %v667
        %715 = vmatmul.bf16.gmra.mxu0 %v679
        %v716 = vpop.f32.mrf.mxu0
        %v717 = vadd.f32 0.0, %v716
        %v718 = vpop.f32.mrf.mxu0
        %719 = vdwg.mxu0
        %v720 = vadd.f32 %v633, %v691
        %v721 = vld [vmem:[%s6] sm:$0x1]
        %v723 = vperm.slane %v721, 0
        %v725 = vadd.f32 %v720, %v723
        %v726 = vmax.f32 %v725, 0.0
        %v727 = vpack.c.bf16 %v726, %v726
        %v728 = vld [vmem:[#allocation3] sm:$0xf]
        %v729 = vld [vmem:[#allocation3 + $0x4] sm:$0xf]
        %v730 = vld [vmem:[#allocation3 + $0x8] sm:$0xf]
        %v731 = vld [vmem:[#allocation3 + $0xc] sm:$0xf]
        %v732 = vld [vmem:[#allocation3 + $0x10] sm:$0xf]
        %v733 = vld [vmem:[#allocation3 + $0x14] sm:$0xf]
        %v734 = vld [vmem:[#allocation3 + $0x18] sm:$0xf]
        %v735 = vld [vmem:[#allocation3 + $0x1c] sm:$0xf]
        %v736 = vld [vmem:[%s8] sm:$0x1]
        %v738 = vperm.slane %v736, 0
        %v748 = vunpack.c.l.b16 %v728
        %v749 = vunpack.c.l.b16 %v729
        %v750 = vunpack.c.l.b16 %v730
        %v751 = vunpack.c.l.b16 %v731
        %v752 = vunpack.c.l.b16 %v732
        %v753 = vunpack.c.l.b16 %v733
        %v754 = vunpack.c.l.b16 %v734
        %v755 = vunpack.c.l.b16 %v735
        %v756 = vpack.c.b16 %v749, %v748
        %v757 = vpack.c.b16 %v751, %v750
        %v758 = vpack.c.b16 %v753, %v752
        %v759 = vpack.c.b16 %v755, %v754
        %vm764 = vcmask 523264
        %v766 = vsel %vm764, %v727, 0
        %768 = vmatpush.bf16.msra.mxu0 0
        %769 = vmatpush.bf16.msra.mxu0 0
        %770 = vmatpush.bf16.msra.mxu0 0
        %771 = vmatpush.bf16.msra.mxu0 0
        %772 = vmatpush.bf16.msra.mxu0 %v759
        %773 = vmatpush.bf16.msra.mxu0 %v758
        %774 = vmatpush.bf16.msra.mxu0 %v757
        %775 = vmatpush.bf16.msra.mxu0 %v756
        %776 = vmatmul.bf16.gmra.mxu0 %v766
        %v777 = vpop.f32.mrf.mxu0
        %v778 = vadd.f32 %v738, %v777
        %v779 = vpop.f32.mrf.mxu0
        %780 = vdwg.mxu0
        %v781 = vmax.f32 %v778, 0.0
        %v782 = vpack.c.bf16 %v781, %v781
        %v783 = vld [vmem:[#allocation6] sm:$0xf]
        %v784 = vld [vmem:[#allocation6 + $0x4] sm:$0xf]
        %v785 = vld [vmem:[#allocation6 + $0x8] sm:$0xf]
        %v786 = vld [vmem:[#allocation6 + $0xc] sm:$0xf]
        %v787 = vld [vmem:[#allocation6 + $0x10] sm:$0xf]
        %v788 = vld [vmem:[#allocation6 + $0x14] sm:$0xf]
        %v789 = vld [vmem:[#allocation6 + $0x18] sm:$0xf]
        %v790 = vld [vmem:[#allocation6 + $0x1c] sm:$0xf]
        %v791 = vld [vmem:[%s10] sm:$0x1]
        %v793 = vperm.slane %v791, 0
        %v803 = vunpack.c.l.b16 %v783
        %v804 = vunpack.c.l.b16 %v784
        %v805 = vunpack.c.l.b16 %v785
        %v806 = vunpack.c.l.b16 %v786
        %v807 = vunpack.c.l.b16 %v787
        %v808 = vunpack.c.l.b16 %v788
        %v809 = vunpack.c.l.b16 %v789
        %v810 = vunpack.c.l.b16 %v790
        %v811 = vpack.c.b16 %v804, %v803
        %v812 = vpack.c.b16 %v806, %v805
        %v813 = vpack.c.b16 %v808, %v807
        %v814 = vpack.c.b16 %v810, %v809
        %v820 = vsel %vm764, %v782, 0
        %822 = vmatpush.bf16.msra.mxu0 0
        %823 = vmatpush.bf16.msra.mxu0 0
        %824 = vmatpush.bf16.msra.mxu0 0
        %825 = vmatpush.bf16.msra.mxu0 0
        %826 = vmatpush.bf16.msra.mxu0 %v814
        %827 = vmatpush.bf16.msra.mxu0 %v813
        %828 = vmatpush.bf16.msra.mxu0 %v812
        %829 = vmatpush.bf16.msra.mxu0 %v811
        %830 = vmatmul.bf16.gmra.mxu0 %v820
        %v831 = vpop.f32.mrf.mxu0
        %v832 = vadd.f32 %v793, %v831
        %v833 = vpop.f32.mrf.mxu0
        %834 = vdwg.mxu0
        %v835 = vadd.f32 %v725, %v832
        %837 = vrot.lane.b32.xlu0 %v691, 64
        %v838 = vpop.permute.xlu0 %837
        %v840 = vadd.f32 %v835, %v838
        %s841 = scalar_lea.vmem %s6, 1
        %v842 = vld [vmem:[%s841] sm:$0x1]
        %v844 = vperm.slane %v842, 0
        %v846 = vadd.f32 %v840, %v844
        %v847 = vmax.f32 %v846, 0.0
        %v848 = vpack.c.bf16 %v847, %v847
        %s849 = scalar_lea.vmem [#allocation3], 32
        %v850 = vld [vmem:[%s849] sm:$0xf]
        %v851 = vld [vmem:[%s849 + $0x4] sm:$0xf]
        %v852 = vld [vmem:[%s849 + $0x8] sm:$0xf]
        %v853 = vld [vmem:[%s849 + $0xc] sm:$0xf]
        %v854 = vld [vmem:[%s849 + $0x10] sm:$0xf]
        %v855 = vld [vmem:[%s849 + $0x14] sm:$0xf]
        %v856 = vld [vmem:[%s849 + $0x18] sm:$0xf]
        %v857 = vld [vmem:[%s849 + $0x1c] sm:$0xf]
        %s858 = scalar_lea.vmem %s8, 1
        %v859 = vld [vmem:[%s858] sm:$0x1]
        %v861 = vperm.slane %v859, 0
        %v871 = vunpack.c.l.b16 %v850
        %v872 = vunpack.c.l.b16 %v851
        %v873 = vunpack.c.l.b16 %v852
        %v874 = vunpack.c.l.b16 %v853
        %v875 = vunpack.c.l.b16 %v854
        %v876 = vunpack.c.l.b16 %v855
        %v877 = vunpack.c.l.b16 %v856
        %v878 = vunpack.c.l.b16 %v857
        %v879 = vpack.c.b16 %v872, %v871
        %v880 = vpack.c.b16 %v874, %v873
        %v881 = vpack.c.b16 %v876, %v875
        %v882 = vpack.c.b16 %v878, %v877
        %v888 = vsel %vm764, %v848, 0
        %890 = vmatpush.bf16.msra.mxu0 0
        %891 = vmatpush.bf16.msra.mxu0 0
        %892 = vmatpush.bf16.msra.mxu0 0
        %893 = vmatpush.bf16.msra.mxu0 0
        %894 = vmatpush.bf16.msra.mxu0 %v882
        %895 = vmatpush.bf16.msra.mxu0 %v881
        %896 = vmatpush.bf16.msra.mxu0 %v880
        %897 = vmatpush.bf16.msra.mxu0 %v879
        %898 = vmatmul.bf16.gmra.mxu0 %v888
        %v899 = vpop.f32.mrf.mxu0
        %v900 = vadd.f32 %v861, %v899
        %v901 = vpop.f32.mrf.mxu0
        %902 = vdwg.mxu0
        %v903 = vmax.f32 %v900, 0.0
        %v904 = vpack.c.bf16 %v903, %v903
        %s905 = scalar_lea.vmem [#allocation6], 32
        %v906 = vld [vmem:[%s905] sm:$0xf]
        %v907 = vld [vmem:[%s905 + $0x4] sm:$0xf]
        %v908 = vld [vmem:[%s905 + $0x8] sm:$0xf]
        %v909 = vld [vmem:[%s905 + $0xc] sm:$0xf]
        %v910 = vld [vmem:[%s905 + $0x10] sm:$0xf]
        %v911 = vld [vmem:[%s905 + $0x14] sm:$0xf]
        %v912 = vld [vmem:[%s905 + $0x18] sm:$0xf]
        %v913 = vld [vmem:[%s905 + $0x1c] sm:$0xf]
        %s914 = scalar_lea.vmem %s10, 1
        %v915 = vld [vmem:[%s914] sm:$0x1]
        %v917 = vperm.slane %v915, 0
        %v927 = vunpack.c.l.b16 %v906
        %v928 = vunpack.c.l.b16 %v907
        %v929 = vunpack.c.l.b16 %v908
        %v930 = vunpack.c.l.b16 %v909
        %v931 = vunpack.c.l.b16 %v910
        %v932 = vunpack.c.l.b16 %v911
        %v933 = vunpack.c.l.b16 %v912
        %v934 = vunpack.c.l.b16 %v913
        %v935 = vpack.c.b16 %v928, %v927
        %v936 = vpack.c.b16 %v930, %v929
        %v937 = vpack.c.b16 %v932, %v931
        %v938 = vpack.c.b16 %v934, %v933
        %v944 = vsel %vm764, %v904, 0
        %946 = vmatpush.bf16.msra.mxu0 0
        %947 = vmatpush.bf16.msra.mxu0 0
        %948 = vmatpush.bf16.msra.mxu0 0
        %949 = vmatpush.bf16.msra.mxu0 0
        %950 = vmatpush.bf16.msra.mxu0 %v938
        %951 = vmatpush.bf16.msra.mxu0 %v937
        %952 = vmatpush.bf16.msra.mxu0 %v936
        %953 = vmatpush.bf16.msra.mxu0 %v935
        %954 = vmatmul.bf16.gmra.mxu0 %v944
        %v955 = vpop.f32.mrf.mxu0
        %v956 = vadd.f32 %v917, %v955
        %v957 = vpop.f32.mrf.mxu0
        %958 = vdwg.mxu0
        %v959 = vadd.f32 %v846, %v956
        %v960 = vadd.f32 %v959, %v704
        %s961 = scalar_lea.vmem %s6, 2
        %v962 = vld [vmem:[%s961] sm:$0x1]
        %v964 = vperm.slane %v962, 0
        %v966 = vadd.f32 %v960, %v964
        %v967 = vmax.f32 %v966, 0.0
        %v968 = vpack.c.bf16 %v967, %v967
        %s969 = scalar_lea.vmem [#allocation3], 64
        %v970 = vld [vmem:[%s969] sm:$0xf]
        %v971 = vld [vmem:[%s969 + $0x4] sm:$0xf]
        %v972 = vld [vmem:[%s969 + $0x8] sm:$0xf]
        %v973 = vld [vmem:[%s969 + $0xc] sm:$0xf]
        %v974 = vld [vmem:[%s969 + $0x10] sm:$0xf]
        %v975 = vld [vmem:[%s969 + $0x14] sm:$0xf]
        %v976 = vld [vmem:[%s969 + $0x18] sm:$0xf]
        %v977 = vld [vmem:[%s969 + $0x1c] sm:$0xf]
        %s978 = scalar_lea.vmem %s8, 2
        %v979 = vld [vmem:[%s978] sm:$0x1]
        %v981 = vperm.slane %v979, 0
        %v991 = vunpack.c.l.b16 %v970
        %v992 = vunpack.c.l.b16 %v971
        %v993 = vunpack.c.l.b16 %v972
        %v994 = vunpack.c.l.b16 %v973
        %v995 = vunpack.c.l.b16 %v974
        %v996 = vunpack.c.l.b16 %v975
        %v997 = vunpack.c.l.b16 %v976
        %v998 = vunpack.c.l.b16 %v977
        %v999 = vpack.c.b16 %v992, %v991
        %v1000 = vpack.c.b16 %v994, %v993
        %v1001 = vpack.c.b16 %v996, %v995
        %v1002 = vpack.c.b16 %v998, %v997
        %v1008 = vsel %vm764, %v968, 0
        %1010 = vmatpush.bf16.msra.mxu0 0
        %1011 = vmatpush.bf16.msra.mxu0 0
        %1012 = vmatpush.bf16.msra.mxu0 0
        %1013 = vmatpush.bf16.msra.mxu0 0
        %1014 = vmatpush.bf16.msra.mxu0 %v1002
        %1015 = vmatpush.bf16.msra.mxu0 %v1001
        %1016 = vmatpush.bf16.msra.mxu0 %v1000
        %1017 = vmatpush.bf16.msra.mxu0 %v999
        %1018 = vmatmul.bf16.gmra.mxu0 %v1008
        %v1019 = vpop.f32.mrf.mxu0
        %v1020 = vadd.f32 %v981, %v1019
        %v1021 = vpop.f32.mrf.mxu0
        %1022 = vdwg.mxu0
        %v1023 = vmax.f32 %v1020, 0.0
        %v1024 = vpack.c.bf16 %v1023, %v1023
        %s1025 = scalar_lea.vmem [#allocation6], 64
        %v1026 = vld [vmem:[%s1025] sm:$0xf]
        %v1027 = vld [vmem:[%s1025 + $0x4] sm:$0xf]
        %v1028 = vld [vmem:[%s1025 + $0x8] sm:$0xf]
        %v1029 = vld [vmem:[%s1025 + $0xc] sm:$0xf]
        %v1030 = vld [vmem:[%s1025 + $0x10] sm:$0xf]
        %v1031 = vld [vmem:[%s1025 + $0x14] sm:$0xf]
        %v1032 = vld [vmem:[%s1025 + $0x18] sm:$0xf]
        %v1033 = vld [vmem:[%s1025 + $0x1c] sm:$0xf]
        %s1034 = scalar_lea.vmem %s10, 2
        %v1035 = vld [vmem:[%s1034] sm:$0x1]
        %v1037 = vperm.slane %v1035, 0
        %v1047 = vunpack.c.l.b16 %v1026
        %v1048 = vunpack.c.l.b16 %v1027
        %v1049 = vunpack.c.l.b16 %v1028
        %v1050 = vunpack.c.l.b16 %v1029
        %v1051 = vunpack.c.l.b16 %v1030
        %v1052 = vunpack.c.l.b16 %v1031
        %v1053 = vunpack.c.l.b16 %v1032
        %v1054 = vunpack.c.l.b16 %v1033
        %v1055 = vpack.c.b16 %v1048, %v1047
        %v1056 = vpack.c.b16 %v1050, %v1049
        %v1057 = vpack.c.b16 %v1052, %v1051
        %v1058 = vpack.c.b16 %v1054, %v1053
        %v1064 = vsel %vm764, %v1024, 0
        %1066 = vmatpush.bf16.msra.mxu0 0
        %1067 = vmatpush.bf16.msra.mxu0 0
        %1068 = vmatpush.bf16.msra.mxu0 0
        %1069 = vmatpush.bf16.msra.mxu0 0
        %1070 = vmatpush.bf16.msra.mxu0 %v1058
        %1071 = vmatpush.bf16.msra.mxu0 %v1057
        %1072 = vmatpush.bf16.msra.mxu0 %v1056
        %1073 = vmatpush.bf16.msra.mxu0 %v1055
        %1074 = vmatmul.bf16.gmra.mxu0 %v1064
        %v1075 = vpop.f32.mrf.mxu0
        %v1076 = vadd.f32 %v1037, %v1075
        %v1077 = vpop.f32.mrf.mxu0
        %1078 = vdwg.mxu0
        %v1079 = vadd.f32 %v966, %v1076
        %1081 = vrot.lane.b32.xlu0 %v704, 64
        %v1082 = vpop.permute.xlu0 %1081
        %v1084 = vadd.f32 %v1079, %v1082
        %s1085 = scalar_lea.vmem %s6, 3
        %v1086 = vld [vmem:[%s1085] sm:$0x1]
        %v1088 = vperm.slane %v1086, 0
        %v1090 = vadd.f32 %v1084, %v1088
        %v1091 = vmax.f32 %v1090, 0.0
        %v1092 = vpack.c.bf16 %v1091, %v1091
        %s1093 = scalar_lea.vmem [#allocation3], 96
        %v1094 = vld [vmem:[%s1093] sm:$0xf]
        %v1095 = vld [vmem:[%s1093 + $0x4] sm:$0xf]
        %v1096 = vld [vmem:[%s1093 + $0x8] sm:$0xf]
        %v1097 = vld [vmem:[%s1093 + $0xc] sm:$0xf]
        %v1098 = vld [vmem:[%s1093 + $0x10] sm:$0xf]
        %v1099 = vld [vmem:[%s1093 + $0x14] sm:$0xf]
        %v1100 = vld [vmem:[%s1093 + $0x18] sm:$0xf]
        %v1101 = vld [vmem:[%s1093 + $0x1c] sm:$0xf]
        %s1102 = scalar_lea.vmem %s8, 3
        %v1103 = vld [vmem:[%s1102] sm:$0x1]
        %v1105 = vperm.slane %v1103, 0
        %v1115 = vunpack.c.l.b16 %v1094
        %v1116 = vunpack.c.l.b16 %v1095
        %v1117 = vunpack.c.l.b16 %v1096
        %v1118 = vunpack.c.l.b16 %v1097
        %v1119 = vunpack.c.l.b16 %v1098
        %v1120 = vunpack.c.l.b16 %v1099
        %v1121 = vunpack.c.l.b16 %v1100
        %v1122 = vunpack.c.l.b16 %v1101
        %v1123 = vpack.c.b16 %v1116, %v1115
        %v1124 = vpack.c.b16 %v1118, %v1117
        %v1125 = vpack.c.b16 %v1120, %v1119
        %v1126 = vpack.c.b16 %v1122, %v1121
        %v1132 = vsel %vm764, %v1092, 0
        %1134 = vmatpush.bf16.msra.mxu0 0
        %1135 = vmatpush.bf16.msra.mxu0 0
        %1136 = vmatpush.bf16.msra.mxu0 0
        %1137 = vmatpush.bf16.msra.mxu0 0
        %1138 = vmatpush.bf16.msra.mxu0 %v1126
        %1139 = vmatpush.bf16.msra.mxu0 %v1125
        %1140 = vmatpush.bf16.msra.mxu0 %v1124
        %1141 = vmatpush.bf16.msra.mxu0 %v1123
        %1142 = vmatmul.bf16.gmra.mxu0 %v1132
        %v1143 = vpop.f32.mrf.mxu0
        %v1144 = vadd.f32 %v1105, %v1143
        %v1145 = vpop.f32.mrf.mxu0
        %1146 = vdwg.mxu0
        %v1147 = vmax.f32 %v1144, 0.0
        %v1148 = vpack.c.bf16 %v1147, %v1147
        %s1149 = scalar_lea.vmem [#allocation6], 96
        %v1150 = vld [vmem:[%s1149] sm:$0xf]
        %v1151 = vld [vmem:[%s1149 + $0x4] sm:$0xf]
        %v1152 = vld [vmem:[%s1149 + $0x8] sm:$0xf]
        %v1153 = vld [vmem:[%s1149 + $0xc] sm:$0xf]
        %v1154 = vld [vmem:[%s1149 + $0x10] sm:$0xf]
        %v1155 = vld [vmem:[%s1149 + $0x14] sm:$0xf]
        %v1156 = vld [vmem:[%s1149 + $0x18] sm:$0xf]
        %v1157 = vld [vmem:[%s1149 + $0x1c] sm:$0xf]
        %s1158 = scalar_lea.vmem %s10, 3
        %v1159 = vld [vmem:[%s1158] sm:$0x1]
        %v1161 = vperm.slane %v1159, 0
        %v1171 = vunpack.c.l.b16 %v1150
        %v1172 = vunpack.c.l.b16 %v1151
        %v1173 = vunpack.c.l.b16 %v1152
        %v1174 = vunpack.c.l.b16 %v1153
        %v1175 = vunpack.c.l.b16 %v1154
        %v1176 = vunpack.c.l.b16 %v1155
        %v1177 = vunpack.c.l.b16 %v1156
        %v1178 = vunpack.c.l.b16 %v1157
        %v1179 = vpack.c.b16 %v1172, %v1171
        %v1180 = vpack.c.b16 %v1174, %v1173
        %v1181 = vpack.c.b16 %v1176, %v1175
        %v1182 = vpack.c.b16 %v1178, %v1177
        %v1188 = vsel %vm764, %v1148, 0
        %1190 = vmatpush.bf16.msra.mxu0 0
        %1191 = vmatpush.bf16.msra.mxu0 0
        %1192 = vmatpush.bf16.msra.mxu0 0
        %1193 = vmatpush.bf16.msra.mxu0 0
        %1194 = vmatpush.bf16.msra.mxu0 %v1182
        %1195 = vmatpush.bf16.msra.mxu0 %v1181
        %1196 = vmatpush.bf16.msra.mxu0 %v1180
        %1197 = vmatpush.bf16.msra.mxu0 %v1179
        %1198 = vmatmul.bf16.gmra.mxu0 %v1188
        %v1199 = vpop.f32.mrf.mxu0
        %v1200 = vadd.f32 %v1161, %v1199
        %v1201 = vpop.f32.mrf.mxu0
        %1202 = vdwg.mxu0
        %v1203 = vadd.f32 %v1090, %v1200
        %v1204 = vadd.f32 %v1203, %v717
        %s1205 = scalar_lea.vmem %s6, 4
        %v1206 = vld [vmem:[%s1205] sm:$0x1]
        %v1208 = vperm.slane %v1206, 0
        %v1210 = vadd.f32 %v1204, %v1208
        %v1211 = vmax.f32 %v1210, 0.0
        %v1212 = vpack.c.bf16 %v1211, %v1211
        %s1213 = scalar_lea.vmem [#allocation3], 128
        %v1214 = vld [vmem:[%s1213] sm:$0xf]
        %v1215 = vld [vmem:[%s1213 + $0x4] sm:$0xf]
        %v1216 = vld [vmem:[%s1213 + $0x8] sm:$0xf]
        %v1217 = vld [vmem:[%s1213 + $0xc] sm:$0xf]
        %v1218 = vld [vmem:[%s1213 + $0x10] sm:$0xf]
        %v1219 = vld [vmem:[%s1213 + $0x14] sm:$0xf]
        %v1220 = vld [vmem:[%s1213 + $0x18] sm:$0xf]
        %v1221 = vld [vmem:[%s1213 + $0x1c] sm:$0xf]
        %s1222 = scalar_lea.vmem %s8, 4
        %v1223 = vld [vmem:[%s1222] sm:$0x1]
        %v1225 = vperm.slane %v1223, 0
        %v1235 = vunpack.c.l.b16 %v1214
        %v1236 = vunpack.c.l.b16 %v1215
        %v1237 = vunpack.c.l.b16 %v1216
        %v1238 = vunpack.c.l.b16 %v1217
        %v1239 = vunpack.c.l.b16 %v1218
        %v1240 = vunpack.c.l.b16 %v1219
        %v1241 = vunpack.c.l.b16 %v1220
        %v1242 = vunpack.c.l.b16 %v1221
        %v1243 = vpack.c.b16 %v1236, %v1235
        %v1244 = vpack.c.b16 %v1238, %v1237
        %v1245 = vpack.c.b16 %v1240, %v1239
        %v1246 = vpack.c.b16 %v1242, %v1241
        %v1252 = vsel %vm764, %v1212, 0
        %1254 = vmatpush.bf16.msra.mxu0 0
        %1255 = vmatpush.bf16.msra.mxu0 0
        %1256 = vmatpush.bf16.msra.mxu0 0
        %1257 = vmatpush.bf16.msra.mxu0 0
        %1258 = vmatpush.bf16.msra.mxu0 %v1246
        %1259 = vmatpush.bf16.msra.mxu0 %v1245
        %1260 = vmatpush.bf16.msra.mxu0 %v1244
        %1261 = vmatpush.bf16.msra.mxu0 %v1243
        %1262 = vmatmul.bf16.gmra.mxu0 %v1252
        %v1263 = vpop.f32.mrf.mxu0
        %v1264 = vadd.f32 %v1225, %v1263
        %v1265 = vpop.f32.mrf.mxu0
        %1266 = vdwg.mxu0
        %v1267 = vmax.f32 %v1264, 0.0
        %v1268 = vpack.c.bf16 %v1267, %v1267
        %s1269 = scalar_lea.vmem [#allocation6], 128
        %v1270 = vld [vmem:[%s1269] sm:$0xf]
        %v1271 = vld [vmem:[%s1269 + $0x4] sm:$0xf]
        %v1272 = vld [vmem:[%s1269 + $0x8] sm:$0xf]
        %v1273 = vld [vmem:[%s1269 + $0xc] sm:$0xf]
        %v1274 = vld [vmem:[%s1269 + $0x10] sm:$0xf]
        %v1275 = vld [vmem:[%s1269 + $0x14] sm:$0xf]
        %v1276 = vld [vmem:[%s1269 + $0x18] sm:$0xf]
        %v1277 = vld [vmem:[%s1269 + $0x1c] sm:$0xf]
        %s1278 = scalar_lea.vmem %s10, 4
        %v1279 = vld [vmem:[%s1278] sm:$0x1]
        %v1281 = vperm.slane %v1279, 0
        %v1291 = vunpack.c.l.b16 %v1270
        %v1292 = vunpack.c.l.b16 %v1271
        %v1293 = vunpack.c.l.b16 %v1272
        %v1294 = vunpack.c.l.b16 %v1273
        %v1295 = vunpack.c.l.b16 %v1274
        %v1296 = vunpack.c.l.b16 %v1275
        %v1297 = vunpack.c.l.b16 %v1276
        %v1298 = vunpack.c.l.b16 %v1277
        %v1299 = vpack.c.b16 %v1292, %v1291
        %v1300 = vpack.c.b16 %v1294, %v1293
        %v1301 = vpack.c.b16 %v1296, %v1295
        %v1302 = vpack.c.b16 %v1298, %v1297
        %v1308 = vsel %vm764, %v1268, 0
        %1310 = vmatpush.bf16.msra.mxu0 0
        %1311 = vmatpush.bf16.msra.mxu0 0
        %1312 = vmatpush.bf16.msra.mxu0 0
        %1313 = vmatpush.bf16.msra.mxu0 0
        %1314 = vmatpush.bf16.msra.mxu0 %v1302
        %1315 = vmatpush.bf16.msra.mxu0 %v1301
        %1316 = vmatpush.bf16.msra.mxu0 %v1300
        %1317 = vmatpush.bf16.msra.mxu0 %v1299
        %1318 = vmatmul.bf16.gmra.mxu0 %v1308
        %v1319 = vpop.f32.mrf.mxu0
        %v1320 = vadd.f32 %v1281, %v1319
        %v1321 = vpop.f32.mrf.mxu0
        %1322 = vdwg.mxu0
        %v1323 = vadd.f32 %v1210, %v1320
        %v1324 = vld [vmem:[%s11] sm:$0x1]
        %v1325 = vmax.f32 %v1323, 0.0
        %v1326 = vpack.c.bf16 %v1325, %v1325
        %v1327 = vld [vmem:[#allocation2] sm:$0x1]
        %1329 = vset.pattern.permute.xlu0 0
        %1330 = vperm.xlu0 %1329, %v1327
        %v1331 = vpop.permute.xlu0 %1330
        %v1333 = vperm.slane %v1331, 0
        %v1335 = vsel %vm764, %v1324, 0
        %v1338 = vsel %vm764, %v1326, 0
        %1340 = vmatpush.bf16.xpose.msra.mxu0 0
        %1341 = vmatpush.bf16.xpose.msra.mxu0 0
        %1342 = vmatpush.bf16.xpose.msra.mxu0 0
        %1343 = vmatpush.bf16.xpose.msra.mxu0 0
        %1344 = vmatpush.bf16.xpose.msra.mxu0 0
        %1345 = vmatpush.bf16.xpose.msra.mxu0 0
        %1346 = vmatpush.bf16.xpose.msra.mxu0 0
        %1347 = vmatpush.bf16.xpose.msra.mxu0 %v1338
        %1348 = vmatmul.bf16.gmra.mxu0 %v1335
        %v1349 = vpop.f32.mrf.mxu0
        %v1350 = vadd.f32 %v1333, %v1349
        %v1351 = vpop.f32.mrf.mxu0
        %1352 = vdwg.mxu0
        %vm1353 = vcmask 57344
        %1354 = vst.msk [vmem:[%s516] sm:$0x1] %vm1353, %v1350
        %s1355 = sand.u32 %s343, 1
        %s1356 = scalar_lea.sflag [#allocation5], %s1355
        %s1357 = sand.u32 %s343, 1
        %s1358 = scalar_lea.vmem [#allocation8], %s1357
        // Predicated region
        $region81: #{tpu_custom_call.1} parent=71 // pred_check
          %p1359 = pneg %p353
        $region82: #{tpu_custom_call.1} parent=71 // pred_check_branch
          %1361 = sbr.rel (%p1359) target = $region84
        $region83: #{tpu_custom_call.1} parent=71 // pred_region
          %1363 = vsyncadd %s1356, 0
          %s1364 = sadd.s32 %s36, %s35
          %s1365 = scalar_lea.hbm %s13, %s1364
          %s1367 = sshll.u32 %s1358, 4
          %s1368 = int_to_ptr.vmem [resolvable:$true] %s1367
          %s1369 = sshll.u32 %s1365, 4
          %s1370 = int_to_ptr.hbm [resolvable:$true] %s1369
          %1372 = dma.vmem_to_hbm [thread:$0]  %s1368, 16, %s1370, %s1356
        $region84: #{tpu_custom_call.1} parent=71 // pred_fallthru
          _
      $region72: #{tpu_custom_call.1} parent=5 // pred_fallthru
        _
      %p1373 = scmp.le.s32.totalorder 2, %s26
      // Predicated region
      $region85: #{tpu_custom_call.1} parent=5 // pred_check
        %p1374 = pneg %p1373
      $region86: #{tpu_custom_call.1} parent=5 // pred_check_branch
        %1376 = sbr.rel (%p1374) target = $region88
      $region87: #{tpu_custom_call.1} parent=5 // pred_region
        %s1377 = ssub.s32 %s26, 2
        // Predicated region
        $region89: #{tpu_custom_call.1} parent=87 // pred_check
          %p1378 = pneg %p359
        $region90: #{tpu_custom_call.1} parent=87 // pred_check_branch
          %1380 = sbr.rel (%p1378) target = $region92
        $region91: #{tpu_custom_call.1} parent=87 // pred_region
          %s1381 = sand.u32 %s344, 1
          %s1382 = scalar_lea.sflag [#allocation5], %s1381
          %s1383 = sand.u32 %s344, 1
          %s1384 = scalar_lea.vmem [#allocation8], %s1383
          %1386 = dma.done %s1382, 16
        $region92: #{tpu_custom_call.1} parent=87 // pred_fallthru
          _
      $region88: #{tpu_custom_call.1} parent=5 // pred_fallthru
        _
    $region6: #{tpu_custom_call.1} parent=1 // loop_footer
      %s30 = sadd.s32 1, %s26
    $region7: #{tpu_custom_call.1} parent=1 // loop_footer_branch
      %25 = sbr.rel target = $region3
    $region8: #{tpu_custom_call.1} parent=1 // loop_exit
      _
    %1387 = vsyncpa [#allocation4], 1
    %s1388 = scalar_lea.sflag [#allocation4], 1
    %1389 = vsyncpa %s1388, 1
    %1390 = vsyncpa [#allocation7], 1
    %1391 = vsyncpa [#allocation5], 1
    %s1392 = scalar_lea.sflag [#allocation5], 1
    %1393 = vsyncpa %s1392, 1

</llo_original>
